<compile_context>
chip_gen: v7x
topology: tpu7x:2x2x1
jax: 0.10.0
libtpu: 0.0.40
codegen_flags: <defaults>
</compile_context>

<pallas_src>
import functools
import math

import jax
import jax.numpy as jnp
from jax.experimental import pallas as pl
from jax.experimental.pallas import tpu as pltpu

IN_DIM = 28 * 28      # 784
H1_DIM = 400
H2_DIM = 20
FEAT_DIM = 2
FEAT_PAD = 128        # lane-dense padded feature width (cols 2.. are zeros)


def _round_up(n, m):
    return ((n + m - 1) // m) * m


def tsne_kernel(x_ref,
                we1_ref, be1_ref, we2_ref, be2_ref, we3_ref, be3_ref,
                wd1_ref, bd1_ref, wd2_ref, bd2_ref, wd3_ref, bd3_ref,
                feat_ref, recon_ref):
    cdt = we1_ref.dtype  # compute dtype of the streamed operands (f32 or bf16)
    x = x_ref[...]

    # ----- Encoder -----
    h1 = jnp.dot(x, we1_ref[...], preferred_element_type=jnp.float32) + be1_ref[...]
    h1 = jnp.maximum(h1, 0.0).astype(cdt)                        # ReLU
    h2 = jnp.dot(h1, we2_ref[...], preferred_element_type=jnp.float32) + be2_ref[...]
    h2 = jnp.maximum(h2, 0.0).astype(cdt)                        # ReLU
    feat = jnp.dot(h2, we3_ref[...], preferred_element_type=jnp.float32) + be3_ref[...]
    feat_ref[...] = feat                                          # (tb, 128), f32, lane-dense

    # ----- Decoder -----
    d1 = jnp.dot(feat.astype(cdt), wd1_ref[...], preferred_element_type=jnp.float32) + bd1_ref[...]
    d1 = jnp.maximum(d1, 0.0).astype(cdt)                        # ReLU
    d2 = jnp.dot(d1, wd2_ref[...], preferred_element_type=jnp.float32) + bd2_ref[...]
    d2 = jnp.maximum(d2, 0.0).astype(cdt)                        # ReLU
    logits = jnp.dot(d2, wd3_ref[...], preferred_element_type=jnp.float32) + bd3_ref[...]
    recon_ref[...] = jax.nn.sigmoid(logits)                      # Sigmoid


def _prep_params(params, compute_dtype):
    """Pad the 2-wide feature boundary to 128 lanes and cast weights."""
    (we1, be1, we2, be2, we3, be3,
     wd1, bd1, wd2, bd2, wd3, bd3) = params
    we3p = jnp.zeros((H2_DIM, FEAT_PAD), jnp.float32).at[:, :FEAT_DIM].set(we3)
    be3p = jnp.zeros((1, FEAT_PAD), jnp.float32).at[:, :FEAT_DIM].set(be3)
    wd1p = jnp.zeros((FEAT_PAD, H2_DIM), jnp.float32).at[:FEAT_DIM, :].set(wd1)

    def w(a):  # weights stream through the MXU -> compute dtype
        return a.astype(compute_dtype)

    def b(a):  # biases are added to f32 accumulators -> keep f32
        return a.astype(jnp.float32)

    return (w(we1), b(be1), w(we2), b(be2), w(we3p), b(be3p),
            w(wd1p), b(bd1), w(wd2), b(bd2), w(wd3), b(bd3))


@functools.partial(jax.jit, static_argnames=("tile_b", "compute_dtype"))
def tsne_forward(x, params, *, tile_b=256, compute_dtype=jnp.float32):
    """Returns (feature, recon_x) exactly like TSNE.forward."""
    B, D = x.shape
    assert D == IN_DIM

    # Effective batch tile: multiple of 8 (sublanes), no larger than needed.
    tb = min(tile_b, _round_up(B, 8))
    tb = _round_up(tb, 8)
    B_pad = _round_up(B, tb)
    if B_pad != B:
        x = jnp.pad(x, ((0, B_pad - B), (0, 0)))
    num_tiles = B_pad // tb

    xc = x.astype(compute_dtype)
    prepped = _prep_params(params, compute_dtype)

    def row_spec(d):
        return pl.BlockSpec((tb, d), lambda i: (i, 0))

    def const_spec(shape):
        return pl.BlockSpec(shape, lambda i: (0, 0))

    in_specs = [row_spec(IN_DIM)] + [const_spec(p.shape) for p in prepped]
    out_specs = [row_spec(FEAT_PAD), row_spec(IN_DIM)]

    # Advisory cost estimate (per padded batch row).
    per_row_flops = 2 * (IN_DIM * H1_DIM + H1_DIM * H2_DIM + H2_DIM * FEAT_PAD
                         + FEAT_PAD * H2_DIM + H2_DIM * H1_DIM + H1_DIM * IN_DIM)
    weight_bytes = sum(int(math.prod(p.shape)) * p.dtype.itemsize for p in prepped)
    bytes_accessed = (B_pad * IN_DIM * xc.dtype.itemsize            # x in
                      + B_pad * (IN_DIM + FEAT_PAD) * 4             # outputs
                      + weight_bytes)

    feat_pad, recon = pl.pallas_call(
        tsne_kernel,
        out_shape=(
            jax.ShapeDtypeStruct((B_pad, FEAT_PAD), jnp.float32),   # padded feature
            jax.ShapeDtypeStruct((B_pad, IN_DIM), jnp.float32),     # recon_x
        ),
        grid_spec=pltpu.PrefetchScalarGridSpec(
            num_scalar_prefetch=0,
            grid=(num_tiles,),
            in_specs=in_specs,
            out_specs=out_specs,
        ),
        compiler_params=pltpu.CompilerParams(
            dimension_semantics=("parallel",),          # v7x dual-TC sharding
            vmem_limit_bytes=48 * 1024 * 1024,          # fits v5e/v6e/v7x budgets
        ),
        cost_estimate=pl.CostEstimate(
            flops=B_pad * per_row_flops,
            transcendentals=B_pad * IN_DIM,             # sigmoid
            bytes_accessed=bytes_accessed,
        ),
    )(xc, *prepped)

    return feat_pad[:B, :FEAT_DIM], recon[:B, :]


def init_linear(key, fan_in, fan_out):
    """PyTorch-style nn.Linear init: U(-1/sqrt(fan_in), 1/sqrt(fan_in)).
    Weight stored transposed as (fan_in, fan_out); bias as (1, fan_out)."""
    kw, kb = jax.random.split(key)
    bound = 1.0 / jnp.sqrt(jnp.float32(fan_in))
    w = jax.random.uniform(kw, (fan_in, fan_out), jnp.float32, -bound, bound)
    b = jax.random.uniform(kb, (1, fan_out), jnp.float32, -bound, bound)
    return w, b


def init_params(seed=0):
    key = jax.random.PRNGKey(seed)
    keys = jax.random.split(key, 6)
    # Encoder: 784 -> 400 -> 20 -> 2
    we1, be1 = init_linear(keys[0], IN_DIM, H1_DIM)
    we2, be2 = init_linear(keys[1], H1_DIM, H2_DIM)
    we3, be3 = init_linear(keys[2], H2_DIM, FEAT_DIM)
    # Decoder: 2 -> 20 -> 400 -> 784
    wd1, bd1 = init_linear(keys[3], FEAT_DIM, H2_DIM)
    wd2, bd2 = init_linear(keys[4], H2_DIM, H1_DIM)
    wd3, bd3 = init_linear(keys[5], H1_DIM, IN_DIM)
    return (we1, be1, we2, be2, we3, be3,
            wd1, bd1, wd2, bd2, wd3, bd3)


def reference_forward(x, params):
    (we1, be1, we2, be2, we3, be3,
     wd1, bd1, wd2, bd2, wd3, bd3) = params
    h1 = jnp.maximum(x @ we1 + be1, 0.0)
    h2 = jnp.maximum(h1 @ we2 + be2, 0.0)
    feat = h2 @ we3 + be3
    d1 = jnp.maximum(feat @ wd1 + bd1, 0.0)
    d2 = jnp.maximum(d1 @ wd2 + bd2, 0.0)
    recon = jax.nn.sigmoid(d2 @ wd3 + bd3)
    return feat, recon


if __name__ == "__main__":
    B = 8
    key = jax.random.PRNGKey(0)
    x = jax.random.uniform(key, (B, IN_DIM), jnp.float32)  # MNIST-like flattened input
    params = init_params(seed=0)

    feat_ref, recon_ref = reference_forward(x, params)

    # f32 path: exact-ish match against the pure-JAX reference.
    feat, recon = tsne_forward(x, params, tile_b=256, compute_dtype=jnp.float32)
    jax.block_until_ready((feat, recon))
    assert feat.shape == (B, FEAT_DIM) and recon.shape == (B, IN_DIM)
    assert jnp.allclose(feat, feat_ref, atol=1e-4, rtol=1e-4)
    assert jnp.allclose(recon, recon_ref, atol=1e-4, rtol=1e-4)

    # bf16-streaming path (HBM-bandwidth optimization): loose tolerance.
    feat_bf, recon_bf = tsne_forward(x, params, tile_b=256, compute_dtype=jnp.bfloat16)
    jax.block_until_ready((feat_bf, recon_bf))
    assert jnp.allclose(feat_bf, feat_ref, atol=1e-1, rtol=1e-1)
    assert jnp.allclose(recon_bf, recon_ref, atol=1e-1, rtol=1e-1)

    print("KERNEL_OK")
</pallas_src>

<mosaic_0001>
module attributes {stable_mosaic.version = 11 : i64} {
  func.func @tsne_kernel(%arg0: i32, %arg1: memref<8x784xf32, #tpu.memory_space<vmem>>, %arg2: memref<784x400xf32, #tpu.memory_space<vmem>>, %arg3: memref<1x400xf32, #tpu.memory_space<vmem>>, %arg4: memref<400x20xf32, #tpu.memory_space<vmem>>, %arg5: memref<1x20xf32, #tpu.memory_space<vmem>>, %arg6: memref<20x128xf32, #tpu.memory_space<vmem>>, %arg7: memref<1x128xf32, #tpu.memory_space<vmem>>, %arg8: memref<128x20xf32, #tpu.memory_space<vmem>>, %arg9: memref<1x20xf32, #tpu.memory_space<vmem>>, %arg10: memref<20x400xf32, #tpu.memory_space<vmem>>, %arg11: memref<1x400xf32, #tpu.memory_space<vmem>>, %arg12: memref<400x784xf32, #tpu.memory_space<vmem>>, %arg13: memref<1x784xf32, #tpu.memory_space<vmem>>, %arg14: memref<8x128xf32, #tpu.memory_space<vmem>>, %arg15: memref<8x784xf32, #tpu.memory_space<vmem>>) attributes {dimension_semantics = [#tpu.dimension_semantics<parallel>], iteration_bounds = array<i64: 1>, scalar_prefetch = 0 : i64, scratch_operands = 0 : i64, tpu.core_type = #tpu.core_type<tc>, window_params = [{transform_indices = @transform_0, window_bounds = array<i64: 8, 784>}, {pipeline_mode = #tpu.pipeline_mode<synchronous>, transform_indices = @transform_1, window_bounds = array<i64: 784, 400>}, {pipeline_mode = #tpu.pipeline_mode<synchronous>, transform_indices = @transform_2, window_bounds = array<i64: 1, 400>}, {pipeline_mode = #tpu.pipeline_mode<synchronous>, transform_indices = @transform_3, window_bounds = array<i64: 400, 20>}, {pipeline_mode = #tpu.pipeline_mode<synchronous>, transform_indices = @transform_4, window_bounds = array<i64: 1, 20>}, {pipeline_mode = #tpu.pipeline_mode<synchronous>, transform_indices = @transform_5, window_bounds = array<i64: 20, 128>}, {pipeline_mode = #tpu.pipeline_mode<synchronous>, transform_indices = @transform_6, window_bounds = array<i64: 1, 128>}, {pipeline_mode = #tpu.pipeline_mode<synchronous>, transform_indices = @transform_7, window_bounds = array<i64: 128, 20>}, {pipeline_mode = #tpu.pipeline_mode<synchronous>, transform_indices = @transform_8, window_bounds = array<i64: 1, 20>}, {pipeline_mode = #tpu.pipeline_mode<synchronous>, transform_indices = @transform_9, window_bounds = array<i64: 20, 400>}, {pipeline_mode = #tpu.pipeline_mode<synchronous>, transform_indices = @transform_10, window_bounds = array<i64: 1, 400>}, {pipeline_mode = #tpu.pipeline_mode<synchronous>, transform_indices = @transform_11, window_bounds = array<i64: 400, 784>}, {pipeline_mode = #tpu.pipeline_mode<synchronous>, transform_indices = @transform_12, window_bounds = array<i64: 1, 784>}, {transform_indices = @transform_13, window_bounds = array<i64: 8, 128>}, {transform_indices = @transform_14, window_bounds = array<i64: 8, 784>}]} {
    %c0 = arith.constant 0 : index
    %c0_0 = arith.constant 0 : index
    %0 = vector.load %arg1[%c0, %c0_0] : memref<8x784xf32, #tpu.memory_space<vmem>>, vector<8x784xf32>
    %c0_1 = arith.constant 0 : index
    %c0_2 = arith.constant 0 : index
    %1 = vector.load %arg2[%c0_1, %c0_2] : memref<784x400xf32, #tpu.memory_space<vmem>>, vector<784x400xf32>
    %cst = arith.constant dense<0.000000e+00> : vector<8x400xf32>
    %2 = tpu.matmul %0, %1, %cst {dimension_numbers = #tpu.dot_dimension_numbers<[1], [0], [0], [1], [0, 0, 1, 1], [], []>} : vector<8x784xf32>, vector<784x400xf32>, vector<8x400xf32> -> vector<8x400xf32>
    %c0_3 = arith.constant 0 : index
    %c0_4 = arith.constant 0 : index
    %3 = vector.load %arg3[%c0_3, %c0_4] : memref<1x400xf32, #tpu.memory_space<vmem>>, vector<1x400xf32>
    %4 = vector.broadcast %3 : vector<1x400xf32> to vector<8x400xf32>
    %5 = arith.addf %2, %4 : vector<8x400xf32>
    %cst_5 = arith.constant 0.000000e+00 : f32
    %6 = vector.broadcast %cst_5 : f32 to vector<8x400xf32>
    %7 = arith.maximumf %5, %6 : vector<8x400xf32>
    %c0_6 = arith.constant 0 : index
    %c0_7 = arith.constant 0 : index
    %8 = vector.load %arg4[%c0_6, %c0_7] : memref<400x20xf32, #tpu.memory_space<vmem>>, vector<400x20xf32>
    %cst_8 = arith.constant dense<0.000000e+00> : vector<8x20xf32>
    %9 = tpu.matmul %7, %8, %cst_8 {dimension_numbers = #tpu.dot_dimension_numbers<[1], [0], [0], [1], [0, 0, 1, 1], [], []>} : vector<8x400xf32>, vector<400x20xf32>, vector<8x20xf32> -> vector<8x20xf32>
    %c0_9 = arith.constant 0 : index
    %c0_10 = arith.constant 0 : index
    %10 = vector.load %arg5[%c0_9, %c0_10] : memref<1x20xf32, #tpu.memory_space<vmem>>, vector<1x20xf32>
    %11 = vector.broadcast %10 : vector<1x20xf32> to vector<8x20xf32>
    %12 = arith.addf %9, %11 : vector<8x20xf32>
    %cst_11 = arith.constant 0.000000e+00 : f32
    %13 = vector.broadcast %cst_11 : f32 to vector<8x20xf32>
    %14 = arith.maximumf %12, %13 : vector<8x20xf32>
    %c0_12 = arith.constant 0 : index
    %c0_13 = arith.constant 0 : index
    %15 = vector.load %arg6[%c0_12, %c0_13] : memref<20x128xf32, #tpu.memory_space<vmem>>, vector<20x128xf32>
    %cst_14 = arith.constant dense<0.000000e+00> : vector<8x128xf32>
    %16 = tpu.matmul %14, %15, %cst_14 {dimension_numbers = #tpu.dot_dimension_numbers<[1], [0], [0], [1], [0, 0, 1, 1], [], []>} : vector<8x20xf32>, vector<20x128xf32>, vector<8x128xf32> -> vector<8x128xf32>
    %c0_15 = arith.constant 0 : index
    %c0_16 = arith.constant 0 : index
    %17 = vector.load %arg7[%c0_15, %c0_16] : memref<1x128xf32, #tpu.memory_space<vmem>>, vector<1x128xf32>
    %18 = vector.broadcast %17 : vector<1x128xf32> to vector<8x128xf32>
    %19 = arith.addf %16, %18 : vector<8x128xf32>
    %c0_17 = arith.constant 0 : index
    %c0_18 = arith.constant 0 : index
    %20 = vector.load %arg14[%c0_17, %c0_18] : memref<8x128xf32, #tpu.memory_space<vmem>>, vector<8x128xf32>
    tpu.vector_store %arg14[%c0_17, %c0_18], %19 {strides = array<i32>} : memref<8x128xf32, #tpu.memory_space<vmem>>, vector<8x128xf32>,
    %c0_19 = arith.constant 0 : index
    %c0_20 = arith.constant 0 : index
    %21 = vector.load %arg8[%c0_19, %c0_20] : memref<128x20xf32, #tpu.memory_space<vmem>>, vector<128x20xf32>
    %cst_21 = arith.constant dense<0.000000e+00> : vector<8x20xf32>
    %22 = tpu.matmul %19, %21, %cst_21 {dimension_numbers = #tpu.dot_dimension_numbers<[1], [0], [0], [1], [0, 0, 1, 1], [], []>} : vector<8x128xf32>, vector<128x20xf32>, vector<8x20xf32> -> vector<8x20xf32>
    %c0_22 = arith.constant 0 : index
    %c0_23 = arith.constant 0 : index
    %23 = vector.load %arg9[%c0_22, %c0_23] : memref<1x20xf32, #tpu.memory_space<vmem>>, vector<1x20xf32>
    %24 = vector.broadcast %23 : vector<1x20xf32> to vector<8x20xf32>
    %25 = arith.addf %22, %24 : vector<8x20xf32>
    %cst_24 = arith.constant 0.000000e+00 : f32
    %26 = vector.broadcast %cst_24 : f32 to vector<8x20xf32>
    %27 = arith.maximumf %25, %26 : vector<8x20xf32>
    %c0_25 = arith.constant 0 : index
    %c0_26 = arith.constant 0 : index
    %28 = vector.load %arg10[%c0_25, %c0_26] : memref<20x400xf32, #tpu.memory_space<vmem>>, vector<20x400xf32>
    %cst_27 = arith.constant dense<0.000000e+00> : vector<8x400xf32>
    %29 = tpu.matmul %27, %28, %cst_27 {dimension_numbers = #tpu.dot_dimension_numbers<[1], [0], [0], [1], [0, 0, 1, 1], [], []>} : vector<8x20xf32>, vector<20x400xf32>, vector<8x400xf32> -> vector<8x400xf32>
    %c0_28 = arith.constant 0 : index
    %c0_29 = arith.constant 0 : index
    %30 = vector.load %arg11[%c0_28, %c0_29] : memref<1x400xf32, #tpu.memory_space<vmem>>, vector<1x400xf32>
    %31 = vector.broadcast %30 : vector<1x400xf32> to vector<8x400xf32>
    %32 = arith.addf %29, %31 : vector<8x400xf32>
    %cst_30 = arith.constant 0.000000e+00 : f32
    %33 = vector.broadcast %cst_30 : f32 to vector<8x400xf32>
    %34 = arith.maximumf %32, %33 : vector<8x400xf32>
    %c0_31 = arith.constant 0 : index
    %c0_32 = arith.constant 0 : index
    %35 = vector.load %arg12[%c0_31, %c0_32] : memref<400x784xf32, #tpu.memory_space<vmem>>, vector<400x784xf32>
    %cst_33 = arith.constant dense<0.000000e+00> : vector<8x784xf32>
    %36 = tpu.matmul %34, %35, %cst_33 {dimension_numbers = #tpu.dot_dimension_numbers<[1], [0], [0], [1], [0, 0, 1, 1], [], []>} : vector<8x400xf32>, vector<400x784xf32>, vector<8x784xf32> -> vector<8x784xf32>
    %c0_34 = arith.constant 0 : index
    %c0_35 = arith.constant 0 : index
    %37 = vector.load %arg13[%c0_34, %c0_35] : memref<1x784xf32, #tpu.memory_space<vmem>>, vector<1x784xf32>
    %38 = vector.broadcast %37 : vector<1x784xf32> to vector<8x784xf32>
    %39 = arith.addf %36, %38 : vector<8x784xf32>
    %40 = arith.negf %39 : vector<8x784xf32>
    %41 = math.exp %40 : vector<8x784xf32>
    %cst_36 = arith.constant 1.000000e+00 : f32
    %42 = vector.broadcast %cst_36 : f32 to vector<8x784xf32>
    %43 = arith.addf %42, %41 : vector<8x784xf32>
    %44 = arith.divf %42, %43 : vector<8x784xf32>
    %c0_37 = arith.constant 0 : index
    %c0_38 = arith.constant 0 : index
    %45 = vector.load %arg15[%c0_37, %c0_38] : memref<8x784xf32, #tpu.memory_space<vmem>>, vector<8x784xf32>
    tpu.vector_store %arg15[%c0_37, %c0_38], %44 {strides = array<i32>} : memref<8x784xf32, #tpu.memory_space<vmem>>, vector<8x784xf32>,
    return
  }
  func.func @transform_0(%arg0: i32) -> (i32, i32) {
    %c0_i32 = arith.constant 0 : i32
    %c0_i32_0 = arith.constant 0 : i32
    return %arg0, %c0_i32 : i32, i32
  }
  func.func @transform_1(%arg0: i32) -> (i32, i32) {
    %c0_i32 = arith.constant 0 : i32
    %c0_i32_0 = arith.constant 0 : i32
    %c0_i32_1 = arith.constant 0 : i32
    return %c0_i32, %c0_i32_0 : i32, i32
  }
  func.func @transform_2(%arg0: i32) -> (i32, i32) {
    %c0_i32 = arith.constant 0 : i32
    %c0_i32_0 = arith.constant 0 : i32
    %c0_i32_1 = arith.constant 0 : i32
    return %c0_i32, %c0_i32_0 : i32, i32
  }
  func.func @transform_3(%arg0: i32) -> (i32, i32) {
    %c0_i32 = arith.constant 0 : i32
    %c0_i32_0 = arith.constant 0 : i32
    %c0_i32_1 = arith.constant 0 : i32
    return %c0_i32, %c0_i32_0 : i32, i32
  }
  func.func @transform_4(%arg0: i32) -> (i32, i32) {
    %c0_i32 = arith.constant 0 : i32
    %c0_i32_0 = arith.constant 0 : i32
    %c0_i32_1 = arith.constant 0 : i32
    return %c0_i32, %c0_i32_0 : i32, i32
  }
  func.func @transform_5(%arg0: i32) -> (i32, i32) {
    %c0_i32 = arith.constant 0 : i32
    %c0_i32_0 = arith.constant 0 : i32
    %c0_i32_1 = arith.constant 0 : i32
    return %c0_i32, %c0_i32_0 : i32, i32
  }
  func.func @transform_6(%arg0: i32) -> (i32, i32) {
    %c0_i32 = arith.constant 0 : i32
    %c0_i32_0 = arith.constant 0 : i32
    %c0_i32_1 = arith.constant 0 : i32
    return %c0_i32, %c0_i32_0 : i32, i32
  }
  func.func @transform_7(%arg0: i32) -> (i32, i32) {
    %c0_i32 = arith.constant 0 : i32
    %c0_i32_0 = arith.constant 0 : i32
    %c0_i32_1 = arith.constant 0 : i32
    return %c0_i32, %c0_i32_0 : i32, i32
  }
  func.func @transform_8(%arg0: i32) -> (i32, i32) {
    %c0_i32 = arith.constant 0 : i32
    %c0_i32_0 = arith.constant 0 : i32
    %c0_i32_1 = arith.constant 0 : i32
    return %c0_i32, %c0_i32_0 : i32, i32
  }
  func.func @transform_9(%arg0: i32) -> (i32, i32) {
    %c0_i32 = arith.constant 0 : i32
    %c0_i32_0 = arith.constant 0 : i32
    %c0_i32_1 = arith.constant 0 : i32
    return %c0_i32, %c0_i32_0 : i32, i32
  }
  func.func @transform_10(%arg0: i32) -> (i32, i32) {
    %c0_i32 = arith.constant 0 : i32
    %c0_i32_0 = arith.constant 0 : i32
    %c0_i32_1 = arith.constant 0 : i32
    return %c0_i32, %c0_i32_0 : i32, i32
  }
  func.func @transform_11(%arg0: i32) -> (i32, i32) {
    %c0_i32 = arith.constant 0 : i32
    %c0_i32_0 = arith.constant 0 : i32
    %c0_i32_1 = arith.constant 0 : i32
    return %c0_i32, %c0_i32_0 : i32, i32
  }
  func.func @transform_12(%arg0: i32) -> (i32, i32) {
    %c0_i32 = arith.constant 0 : i32
    %c0_i32_0 = arith.constant 0 : i32
    %c0_i32_1 = arith.constant 0 : i32
    return %c0_i32, %c0_i32_0 : i32, i32
  }
  func.func @transform_13(%arg0: i32) -> (i32, i32) {
    %c0_i32 = arith.constant 0 : i32
    %c0_i32_0 = arith.constant 0 : i32
    return %arg0, %c0_i32 : i32, i32
  }
  func.func @transform_14(%arg0: i32) -> (i32, i32) {
    %c0_i32 = arith.constant 0 : i32
    %c0_i32_0 = arith.constant 0 : i32
    return %arg0, %c0_i32 : i32, i32
  }
}

</mosaic_0001>

<llo_original>
// kernel: tsne_forward.1
$region0: #{tsne_forward.1}
  #allocation0 [shape = 'u32[]', space=smem, size = 0x4, offset = 0x4, fixed_abs, tag = 'smem constant byte address 0x4 - core index']
  #allocation1 [shape = 'u32[144,128]{1,0:T(1,128)}', space=vmem, size = 0x12000, scoped, tag = 'internal scratch']
  %s0 = inlined_call_operand.vmem [shape: f32[8,784], index: 0, kind: input, shape index: {}]
  %s1 = inlined_call_operand.vmem [shape: f32[784,400], index: 1, kind: input, shape index: {}]
  %s2 = inlined_call_operand.vmem [shape: f32[1,400], index: 2, kind: input, shape index: {}]
  %s3 = inlined_call_operand.vmem [shape: f32[400,20], index: 3, kind: input, shape index: {}]
  %s4 = inlined_call_operand.vmem [shape: f32[1,20], index: 4, kind: input, shape index: {}]
  %s5 = inlined_call_operand.vmem [shape: f32[20,128], index: 5, kind: input, shape index: {}]
  %s6 = inlined_call_operand.vmem [shape: f32[1,128], index: 6, kind: input, shape index: {}]
  %s7 = inlined_call_operand.vmem [shape: f32[128,20], index: 7, kind: input, shape index: {}]
  %s8 = inlined_call_operand.vmem [shape: f32[1,20], index: 8, kind: input, shape index: {}]
  %s9 = inlined_call_operand.vmem [shape: f32[20,400], index: 9, kind: input, shape index: {}]
  %s10 = inlined_call_operand.vmem [shape: f32[1,400], index: 10, kind: input, shape index: {}]
  %s11 = inlined_call_operand.vmem [shape: f32[400,784], index: 11, kind: input, shape index: {}]
  %s12 = inlined_call_operand.vmem [shape: f32[1,784], index: 12, kind: input, shape index: {}]
  %s13 = inlined_call_operand.vmem [shape: f32[8,128], index: 13, kind: output, shape index: {0}]
  %s14 = inlined_call_operand.hbm [shape: f32[8,784], index: 14, kind: output, shape index: {1}]
  %15 = xla_tuple %s13, %s14
  %s16 = sld [smem:[#allocation0]]
  $region70: #{tsne_forward.1} parent=0
    _
  %s18 = ssub.s32 1, %s16
  %s19 = scalar_select 0, %s18, %s16
  $region1: #{tsne_forward.1} parent=0
    #allocation2 [shape = 'u8[28672]{0}', space=vmem, size = 0x7000, scoped, tag = 'output window, operand 1, single buffered']
    #allocation3 [shape = 's32[1]{0}', space=sflag, size = 0x4, scoped, tag = 'scoped memory for tsne_forward.1']
    %20 = vsyncpa [#allocation3], 0
    // Predicated region
    $region2: #{tsne_forward.1} parent=1 // pred_check
      _
    $region3: #{tsne_forward.1} parent=1 // pred_check_branch
      %22 = sbr.rel (0) target = $region5
    $region4: #{tsne_forward.1} parent=1 // pred_region
      _
    $region5: #{tsne_forward.1} parent=1 // pred_fallthru
      _
    // Predicated region
    $region6: #{tsne_forward.1} parent=1 // pred_check
      _
    $region7: #{tsne_forward.1} parent=1 // pred_check_branch
      %24 = sbr.rel (0) target = $region9
    $region8: #{tsne_forward.1} parent=1 // pred_region
      _
    $region9: #{tsne_forward.1} parent=1 // pred_fallthru
      _
    // Predicated region
    $region10: #{tsne_forward.1} parent=1 // pred_check
      _
    $region11: #{tsne_forward.1} parent=1 // pred_check_branch
      %26 = sbr.rel (0) target = $region13
    $region12: #{tsne_forward.1} parent=1 // pred_region
      _
    $region13: #{tsne_forward.1} parent=1 // pred_fallthru
      _
    // Predicated region
    $region14: #{tsne_forward.1} parent=1 // pred_check
      _
    $region15: #{tsne_forward.1} parent=1 // pred_check_branch
      %28 = sbr.rel (0) target = $region17
    $region16: #{tsne_forward.1} parent=1 // pred_region
      _
    $region17: #{tsne_forward.1} parent=1 // pred_fallthru
      _
    // Predicated region
    $region18: #{tsne_forward.1} parent=1 // pred_check
      _
    $region19: #{tsne_forward.1} parent=1 // pred_check_branch
      %30 = sbr.rel (0) target = $region21
    $region20: #{tsne_forward.1} parent=1 // pred_region
      _
    $region21: #{tsne_forward.1} parent=1 // pred_fallthru
      _
    // Predicated region
    $region22: #{tsne_forward.1} parent=1 // pred_check
      _
    $region23: #{tsne_forward.1} parent=1 // pred_check_branch
      %32 = sbr.rel (0) target = $region25
    $region24: #{tsne_forward.1} parent=1 // pred_region
      _
    $region25: #{tsne_forward.1} parent=1 // pred_fallthru
      _
    // Predicated region
    $region26: #{tsne_forward.1} parent=1 // pred_check
      _
    $region27: #{tsne_forward.1} parent=1 // pred_check_branch
      %34 = sbr.rel (0) target = $region29
    $region28: #{tsne_forward.1} parent=1 // pred_region
      _
    $region29: #{tsne_forward.1} parent=1 // pred_fallthru
      _
    // Predicated region
    $region30: #{tsne_forward.1} parent=1 // pred_check
      _
    $region31: #{tsne_forward.1} parent=1 // pred_check_branch
      %36 = sbr.rel (0) target = $region33
    $region32: #{tsne_forward.1} parent=1 // pred_region
      _
    $region33: #{tsne_forward.1} parent=1 // pred_fallthru
      _
    // Predicated region
    $region34: #{tsne_forward.1} parent=1 // pred_check
      _
    $region35: #{tsne_forward.1} parent=1 // pred_check_branch
      %38 = sbr.rel (0) target = $region37
    $region36: #{tsne_forward.1} parent=1 // pred_region
      _
    $region37: #{tsne_forward.1} parent=1 // pred_fallthru
      _
    // Predicated region
    $region38: #{tsne_forward.1} parent=1 // pred_check
      _
    $region39: #{tsne_forward.1} parent=1 // pred_check_branch
      %40 = sbr.rel (0) target = $region41
    $region40: #{tsne_forward.1} parent=1 // pred_region
      _
    $region41: #{tsne_forward.1} parent=1 // pred_fallthru
      _
    // Predicated region
    $region42: #{tsne_forward.1} parent=1 // pred_check
      _
    $region43: #{tsne_forward.1} parent=1 // pred_check_branch
      %42 = sbr.rel (0) target = $region45
    $region44: #{tsne_forward.1} parent=1 // pred_region
      _
    $region45: #{tsne_forward.1} parent=1 // pred_fallthru
      _
    // Predicated region
    $region46: #{tsne_forward.1} parent=1 // pred_check
      _
    $region47: #{tsne_forward.1} parent=1 // pred_check_branch
      %44 = sbr.rel (0) target = $region49
    $region48: #{tsne_forward.1} parent=1 // pred_region
      _
    $region49: #{tsne_forward.1} parent=1 // pred_fallthru
      _
    // Predicated region
    $region50: #{tsne_forward.1} parent=1 // pred_check
      _
    $region51: #{tsne_forward.1} parent=1 // pred_check_branch
      %46 = sbr.rel (0) target = $region53
    $region52: #{tsne_forward.1} parent=1 // pred_region
      _
    $region53: #{tsne_forward.1} parent=1 // pred_fallthru
      _
    %v47 = vld [vmem:[%s0] sm:$0xff]
    %v48 = vld [vmem:[%s0 + $0x8] sm:$0xff]
    %v49 = vld [vmem:[%s0 + $0x10] sm:$0xff]
    %v50 = vld [vmem:[%s0 + $0x18] sm:$0xff]
    %v51 = vld [vmem:[%s0 + $0x20] sm:$0xff]
    %v52 = vld [vmem:[%s0 + $0x28] sm:$0xff]
    %v53 = vld [vmem:[%s0 + $0x30] sm:$0xff]
    %v54 = vld [vmem:[%s1] sm:$0xff]
    %v55 = vld [vmem:[%s1 + $0x8] sm:$0xff]
    %v56 = vld [vmem:[%s1 + $0x10] sm:$0xff]
    %v57 = vld [vmem:[%s1 + $0x18] sm:$0xff]
    %v58 = vld [vmem:[%s1 + $0x20] sm:$0xff]
    %v59 = vld [vmem:[%s1 + $0x28] sm:$0xff]
    %v60 = vld [vmem:[%s1 + $0x30] sm:$0xff]
    %v61 = vld [vmem:[%s1 + $0x38] sm:$0xff]
    %v62 = vld [vmem:[%s1 + $0x40] sm:$0xff]
    %v63 = vld [vmem:[%s1 + $0x48] sm:$0xff]
    %v64 = vld [vmem:[%s1 + $0x50] sm:$0xff]
    %v65 = vld [vmem:[%s1 + $0x58] sm:$0xff]
    %v66 = vld [vmem:[%s1 + $0x60] sm:$0xff]
    %v67 = vld [vmem:[%s1 + $0x68] sm:$0xff]
    %v68 = vld [vmem:[%s1 + $0x70] sm:$0xff]
    %v69 = vld [vmem:[%s1 + $0x78] sm:$0xff]
    %v70 = vld [vmem:[%s1 + $0x80] sm:$0xff]
    %v71 = vld [vmem:[%s1 + $0x88] sm:$0xff]
    %v72 = vld [vmem:[%s1 + $0x90] sm:$0xff]
    %v73 = vld [vmem:[%s1 + $0x98] sm:$0xff]
    %v74 = vld [vmem:[%s1 + $0xa0] sm:$0xff]
    %v75 = vld [vmem:[%s1 + $0xa8] sm:$0xff]
    %v76 = vld [vmem:[%s1 + $0xb0] sm:$0xff]
    %v77 = vld [vmem:[%s1 + $0xb8] sm:$0xff]
    %v78 = vld [vmem:[%s1 + $0xc0] sm:$0xff]
    %v79 = vld [vmem:[%s1 + $0xc8] sm:$0xff]
    %v80 = vld [vmem:[%s1 + $0xd0] sm:$0xff]
    %v81 = vld [vmem:[%s1 + $0xd8] sm:$0xff]
    %v82 = vld [vmem:[%s1 + $0xe0] sm:$0xff]
    %v83 = vld [vmem:[%s1 + $0xe8] sm:$0xff]
    %v84 = vld [vmem:[%s1 + $0xf0] sm:$0xff]
    %v85 = vld [vmem:[%s1 + $0xf8] sm:$0xff]
    %v86 = vld [vmem:[%s1 + $0x100] sm:$0xff]
    %v87 = vld [vmem:[%s1 + $0x108] sm:$0xff]
    %v88 = vld [vmem:[%s1 + $0x110] sm:$0xff]
    %v89 = vld [vmem:[%s1 + $0x118] sm:$0xff]
    %v90 = vld [vmem:[%s1 + $0x120] sm:$0xff]
    %v91 = vld [vmem:[%s1 + $0x128] sm:$0xff]
    %v92 = vld [vmem:[%s1 + $0x130] sm:$0xff]
    %v93 = vld [vmem:[%s1 + $0x138] sm:$0xff]
    %v94 = vld [vmem:[%s1 + $0x140] sm:$0xff]
    %v95 = vld [vmem:[%s1 + $0x148] sm:$0xff]
    %v96 = vld [vmem:[%s1 + $0x150] sm:$0xff]
    %v97 = vld [vmem:[%s1 + $0x158] sm:$0xff]
    %v98 = vld [vmem:[%s1 + $0x160] sm:$0xff]
    %v99 = vld [vmem:[%s1 + $0x168] sm:$0xff]
    %v100 = vld [vmem:[%s1 + $0x170] sm:$0xff]
    %v101 = vld [vmem:[%s1 + $0x178] sm:$0xff]
    %v102 = vld [vmem:[%s1 + $0x180] sm:$0xff]
    %v103 = vld [vmem:[%s1 + $0x188] sm:$0xff]
    %v104 = vld [vmem:[%s1 + $0x190] sm:$0xff]
    %v105 = vld [vmem:[%s1 + $0x198] sm:$0xff]
    %v106 = vld [vmem:[%s1 + $0x1a0] sm:$0xff]
    %v107 = vld [vmem:[%s1 + $0x1a8] sm:$0xff]
    %v108 = vld [vmem:[%s1 + $0x1b0] sm:$0xff]
    %v109 = vld [vmem:[%s1 + $0x1b8] sm:$0xff]
    %v110 = vld [vmem:[%s1 + $0x1c0] sm:$0xff]
    %v111 = vld [vmem:[%s1 + $0x1c8] sm:$0xff]
    %v112 = vld [vmem:[%s1 + $0x1d0] sm:$0xff]
    %v113 = vld [vmem:[%s1 + $0x1d8] sm:$0xff]
    %v114 = vld [vmem:[%s1 + $0x1e0] sm:$0xff]
    %v115 = vld [vmem:[%s1 + $0x1e8] sm:$0xff]
    %v116 = vld [vmem:[%s1 + $0x1f0] sm:$0xff]
    %v117 = vld [vmem:[%s1 + $0x1f8] sm:$0xff]
    %v118 = vld [vmem:[%s1 + $0x200] sm:$0xff]
    %v119 = vld [vmem:[%s1 + $0x208] sm:$0xff]
    %v120 = vld [vmem:[%s1 + $0x210] sm:$0xff]
    %v121 = vld [vmem:[%s1 + $0x218] sm:$0xff]
    %v122 = vld [vmem:[%s1 + $0x220] sm:$0xff]
    %v123 = vld [vmem:[%s1 + $0x228] sm:$0xff]
    %v124 = vld [vmem:[%s1 + $0x230] sm:$0xff]
    %v125 = vld [vmem:[%s1 + $0x238] sm:$0xff]
    %v126 = vld [vmem:[%s1 + $0x240] sm:$0xff]
    %v127 = vld [vmem:[%s1 + $0x248] sm:$0xff]
    %v128 = vld [vmem:[%s1 + $0x250] sm:$0xff]
    %v129 = vld [vmem:[%s1 + $0x258] sm:$0xff]
    %v130 = vld [vmem:[%s1 + $0x260] sm:$0xff]
    %v131 = vld [vmem:[%s1 + $0x268] sm:$0xff]
    %v132 = vld [vmem:[%s1 + $0x270] sm:$0xff]
    %v133 = vld [vmem:[%s1 + $0x278] sm:$0xff]
    %v134 = vld [vmem:[%s1 + $0x280] sm:$0xff]
    %v135 = vld [vmem:[%s1 + $0x288] sm:$0xff]
    %v136 = vld [vmem:[%s1 + $0x290] sm:$0xff]
    %v137 = vld [vmem:[%s1 + $0x298] sm:$0xff]
    %v138 = vld [vmem:[%s1 + $0x2a0] sm:$0xff]
    %v139 = vld [vmem:[%s1 + $0x2a8] sm:$0xff]
    %v140 = vld [vmem:[%s1 + $0x2b0] sm:$0xff]
    %v141 = vld [vmem:[%s1 + $0x2b8] sm:$0xff]
    %v142 = vld [vmem:[%s1 + $0x2c0] sm:$0xff]
    %v143 = vld [vmem:[%s1 + $0x2c8] sm:$0xff]
    %v144 = vld [vmem:[%s1 + $0x2d0] sm:$0xff]
    %v145 = vld [vmem:[%s1 + $0x2d8] sm:$0xff]
    %v146 = vld [vmem:[%s1 + $0x2e0] sm:$0xff]
    %v147 = vld [vmem:[%s1 + $0x2e8] sm:$0xff]
    %v148 = vld [vmem:[%s1 + $0x2f0] sm:$0xff]
    %v149 = vld [vmem:[%s1 + $0x2f8] sm:$0xff]
    %v150 = vld [vmem:[%s1 + $0x300] sm:$0xff]
    %v151 = vld [vmem:[%s1 + $0x308] sm:$0xff]
    %v152 = vld [vmem:[%s1 + $0x310] sm:$0xff]
    %v153 = vld [vmem:[%s1 + $0x318] sm:$0xff]
    %v154 = vld [vmem:[%s1 + $0x320] sm:$0xff]
    %v155 = vld [vmem:[%s1 + $0x328] sm:$0xff]
    %v156 = vld [vmem:[%s1 + $0x330] sm:$0xff]
    %v157 = vld [vmem:[%s1 + $0x338] sm:$0xff]
    %v158 = vld [vmem:[%s1 + $0x340] sm:$0xff]
    %v159 = vld [vmem:[%s1 + $0x348] sm:$0xff]
    %v160 = vld [vmem:[%s1 + $0x350] sm:$0xff]
    %v161 = vld [vmem:[%s1 + $0x358] sm:$0xff]
    %v162 = vld [vmem:[%s1 + $0x360] sm:$0xff]
    %v163 = vld [vmem:[%s1 + $0x368] sm:$0xff]
    %v164 = vld [vmem:[%s1 + $0x370] sm:$0xff]
    %v165 = vld [vmem:[%s1 + $0x378] sm:$0xff]
    %v166 = vld [vmem:[%s1 + $0x380] sm:$0xff]
    %v167 = vld [vmem:[%s1 + $0x388] sm:$0xff]
    %v168 = vld [vmem:[%s1 + $0x390] sm:$0xff]
    %v169 = vld [vmem:[%s1 + $0x398] sm:$0xff]
    %v170 = vld [vmem:[%s1 + $0x3a0] sm:$0xff]
    %v171 = vld [vmem:[%s1 + $0x3a8] sm:$0xff]
    %v172 = vld [vmem:[%s1 + $0x3b0] sm:$0xff]
    %v173 = vld [vmem:[%s1 + $0x3b8] sm:$0xff]
    %v174 = vld [vmem:[%s1 + $0x3c0] sm:$0xff]
    %v175 = vld [vmem:[%s1 + $0x3c8] sm:$0xff]
    %v176 = vld [vmem:[%s1 + $0x3d0] sm:$0xff]
    %v177 = vld [vmem:[%s1 + $0x3d8] sm:$0xff]
    %v178 = vld [vmem:[%s1 + $0x3e0] sm:$0xff]
    %v179 = vld [vmem:[%s1 + $0x3e8] sm:$0xff]
    %v180 = vld [vmem:[%s1 + $0x3f0] sm:$0xff]
    %v181 = vld [vmem:[%s1 + $0x3f8] sm:$0xff]
    %v182 = vld [vmem:[%s1 + $0x400] sm:$0xff]
    %v183 = vld [vmem:[%s1 + $0x408] sm:$0xff]
    %v184 = vld [vmem:[%s1 + $0x410] sm:$0xff]
    %v185 = vld [vmem:[%s1 + $0x418] sm:$0xff]
    %v186 = vld [vmem:[%s1 + $0x420] sm:$0xff]
    %v187 = vld [vmem:[%s1 + $0x428] sm:$0xff]
    %v188 = vld [vmem:[%s1 + $0x430] sm:$0xff]
    %v189 = vld [vmem:[%s1 + $0x438] sm:$0xff]
    %v190 = vld [vmem:[%s1 + $0x440] sm:$0xff]
    %v191 = vld [vmem:[%s1 + $0x448] sm:$0xff]
    %v192 = vld [vmem:[%s1 + $0x450] sm:$0xff]
    %v193 = vld [vmem:[%s1 + $0x458] sm:$0xff]
    %v194 = vld [vmem:[%s1 + $0x460] sm:$0xff]
    %v195 = vld [vmem:[%s1 + $0x468] sm:$0xff]
    %v196 = vld [vmem:[%s1 + $0x470] sm:$0xff]
    %v197 = vld [vmem:[%s1 + $0x478] sm:$0xff]
    %v198 = vld [vmem:[%s1 + $0x480] sm:$0xff]
    %v199 = vld [vmem:[%s1 + $0x488] sm:$0xff]
    %v200 = vld [vmem:[%s1 + $0x490] sm:$0xff]
    %v201 = vld [vmem:[%s1 + $0x498] sm:$0xff]
    %v202 = vld [vmem:[%s1 + $0x4a0] sm:$0xff]
    %v203 = vld [vmem:[%s1 + $0x4a8] sm:$0xff]
    %v204 = vld [vmem:[%s1 + $0x4b0] sm:$0xff]
    %v205 = vld [vmem:[%s1 + $0x4b8] sm:$0xff]
    %v206 = vld [vmem:[%s1 + $0x4c0] sm:$0xff]
    %v207 = vld [vmem:[%s1 + $0x4c8] sm:$0xff]
    %v208 = vld [vmem:[%s1 + $0x4d0] sm:$0xff]
    %v209 = vld [vmem:[%s1 + $0x4d8] sm:$0xff]
    %v210 = vld [vmem:[%s1 + $0x4e0] sm:$0xff]
    %v211 = vld [vmem:[%s1 + $0x4e8] sm:$0xff]
    %v212 = vld [vmem:[%s1 + $0x4f0] sm:$0xff]
    %v213 = vld [vmem:[%s1 + $0x4f8] sm:$0xff]
    %v214 = vld [vmem:[%s1 + $0x500] sm:$0xff]
    %v215 = vld [vmem:[%s1 + $0x508] sm:$0xff]
    %v216 = vld [vmem:[%s1 + $0x510] sm:$0xff]
    %v217 = vld [vmem:[%s1 + $0x518] sm:$0xff]
    %v218 = vld [vmem:[%s1 + $0x520] sm:$0xff]
    %v219 = vld [vmem:[%s1 + $0x528] sm:$0xff]
    %v220 = vld [vmem:[%s1 + $0x530] sm:$0xff]
    %v221 = vld [vmem:[%s1 + $0x538] sm:$0xff]
    %v222 = vld [vmem:[%s1 + $0x540] sm:$0xff]
    %v223 = vld [vmem:[%s1 + $0x548] sm:$0xff]
    %v224 = vld [vmem:[%s1 + $0x550] sm:$0xff]
    %v225 = vld [vmem:[%s1 + $0x558] sm:$0xff]
    %v226 = vld [vmem:[%s1 + $0x560] sm:$0xff]
    %v227 = vld [vmem:[%s1 + $0x568] sm:$0xff]
    %v228 = vld [vmem:[%s1 + $0x570] sm:$0xff]
    %v229 = vld [vmem:[%s1 + $0x578] sm:$0xff]
    %v230 = vld [vmem:[%s1 + $0x580] sm:$0xff]
    %v231 = vld [vmem:[%s1 + $0x588] sm:$0xff]
    %v232 = vld [vmem:[%s1 + $0x590] sm:$0xff]
    %v233 = vld [vmem:[%s1 + $0x598] sm:$0xff]
    %v234 = vld [vmem:[%s1 + $0x5a0] sm:$0xff]
    %v235 = vld [vmem:[%s1 + $0x5a8] sm:$0xff]
    %v236 = vld [vmem:[%s1 + $0x5b0] sm:$0xff]
    %v237 = vld [vmem:[%s1 + $0x5b8] sm:$0xff]
    %v238 = vld [vmem:[%s1 + $0x5c0] sm:$0xff]
    %v239 = vld [vmem:[%s1 + $0x5c8] sm:$0xff]
    %v240 = vld [vmem:[%s1 + $0x5d0] sm:$0xff]
    %v241 = vld [vmem:[%s1 + $0x5d8] sm:$0xff]
    %v242 = vld [vmem:[%s1 + $0x5e0] sm:$0xff]
    %v243 = vld [vmem:[%s1 + $0x5e8] sm:$0xff]
    %v244 = vld [vmem:[%s1 + $0x5f0] sm:$0xff]
    %v245 = vld [vmem:[%s1 + $0x5f8] sm:$0xff]
    %v246 = vld [vmem:[%s1 + $0x600] sm:$0xff]
    %v247 = vld [vmem:[%s1 + $0x608] sm:$0xff]
    %v248 = vld [vmem:[%s1 + $0x610] sm:$0xff]
    %v249 = vld [vmem:[%s1 + $0x618] sm:$0xff]
    %v250 = vld [vmem:[%s1 + $0x620] sm:$0xff]
    %v251 = vld [vmem:[%s1 + $0x628] sm:$0xff]
    %v252 = vld [vmem:[%s1 + $0x630] sm:$0xff]
    %v253 = vld [vmem:[%s1 + $0x638] sm:$0xff]
    %v254 = vld [vmem:[%s1 + $0x640] sm:$0xff]
    %v255 = vld [vmem:[%s1 + $0x648] sm:$0xff]
    %v256 = vld [vmem:[%s1 + $0x650] sm:$0xff]
    %v257 = vld [vmem:[%s1 + $0x658] sm:$0xff]
    %v258 = vld [vmem:[%s1 + $0x660] sm:$0xff]
    %v259 = vld [vmem:[%s1 + $0x668] sm:$0xff]
    %v260 = vld [vmem:[%s1 + $0x670] sm:$0xff]
    %v261 = vld [vmem:[%s1 + $0x678] sm:$0xff]
    %v262 = vld [vmem:[%s1 + $0x680] sm:$0xff]
    %v263 = vld [vmem:[%s1 + $0x688] sm:$0xff]
    %v264 = vld [vmem:[%s1 + $0x690] sm:$0xff]
    %v265 = vld [vmem:[%s1 + $0x698] sm:$0xff]
    %v266 = vld [vmem:[%s1 + $0x6a0] sm:$0xff]
    %v267 = vld [vmem:[%s1 + $0x6a8] sm:$0xff]
    %v268 = vld [vmem:[%s1 + $0x6b0] sm:$0xff]
    %v269 = vld [vmem:[%s1 + $0x6b8] sm:$0xff]
    %v270 = vld [vmem:[%s1 + $0x6c0] sm:$0xff]
    %v271 = vld [vmem:[%s1 + $0x6c8] sm:$0xff]
    %v272 = vld [vmem:[%s1 + $0x6d0] sm:$0xff]
    %v273 = vld [vmem:[%s1 + $0x6d8] sm:$0xff]
    %v274 = vld [vmem:[%s1 + $0x6e0] sm:$0xff]
    %v275 = vld [vmem:[%s1 + $0x6e8] sm:$0xff]
    %v276 = vld [vmem:[%s1 + $0x6f0] sm:$0xff]
    %v277 = vld [vmem:[%s1 + $0x6f8] sm:$0xff]
    %v278 = vld [vmem:[%s1 + $0x700] sm:$0xff]
    %v279 = vld [vmem:[%s1 + $0x708] sm:$0xff]
    %v280 = vld [vmem:[%s1 + $0x710] sm:$0xff]
    %v281 = vld [vmem:[%s1 + $0x718] sm:$0xff]
    %v282 = vld [vmem:[%s1 + $0x720] sm:$0xff]
    %v283 = vld [vmem:[%s1 + $0x728] sm:$0xff]
    %v284 = vld [vmem:[%s1 + $0x730] sm:$0xff]
    %v285 = vld [vmem:[%s1 + $0x738] sm:$0xff]
    %v286 = vld [vmem:[%s1 + $0x740] sm:$0xff]
    %v287 = vld [vmem:[%s1 + $0x748] sm:$0xff]
    %v288 = vld [vmem:[%s1 + $0x750] sm:$0xff]
    %v289 = vld [vmem:[%s1 + $0x758] sm:$0xff]
    %v290 = vld [vmem:[%s1 + $0x760] sm:$0xff]
    %v291 = vld [vmem:[%s1 + $0x768] sm:$0xff]
    %v292 = vld [vmem:[%s1 + $0x770] sm:$0xff]
    %v293 = vld [vmem:[%s1 + $0x778] sm:$0xff]
    %v294 = vld [vmem:[%s1 + $0x780] sm:$0xff]
    %v295 = vld [vmem:[%s1 + $0x788] sm:$0xff]
    %v296 = vld [vmem:[%s1 + $0x790] sm:$0xff]
    %v297 = vld [vmem:[%s1 + $0x798] sm:$0xff]
    %v298 = vld [vmem:[%s1 + $0x7a0] sm:$0xff]
    %v299 = vld [vmem:[%s1 + $0x7a8] sm:$0xff]
    %v300 = vld [vmem:[%s1 + $0x7b0] sm:$0xff]
    %v301 = vld [vmem:[%s1 + $0x7b8] sm:$0xff]
    %v302 = vld [vmem:[%s1 + $0x7c0] sm:$0xff]
    %v303 = vld [vmem:[%s1 + $0x7c8] sm:$0xff]
    %v304 = vld [vmem:[%s1 + $0x7d0] sm:$0xff]
    %v305 = vld [vmem:[%s1 + $0x7d8] sm:$0xff]
    %v306 = vld [vmem:[%s1 + $0x7e0] sm:$0xff]
    %v307 = vld [vmem:[%s1 + $0x7e8] sm:$0xff]
    %v308 = vld [vmem:[%s1 + $0x7f0] sm:$0xff]
    %v309 = vld [vmem:[%s1 + $0x7f8] sm:$0xff]
    %v310 = vld [vmem:[%s1 + $0x800] sm:$0xff]
    %v311 = vld [vmem:[%s1 + $0x808] sm:$0xff]
    %v312 = vld [vmem:[%s1 + $0x810] sm:$0xff]
    %v313 = vld [vmem:[%s1 + $0x818] sm:$0xff]
    %v314 = vld [vmem:[%s1 + $0x820] sm:$0xff]
    %v315 = vld [vmem:[%s1 + $0x828] sm:$0xff]
    %v316 = vld [vmem:[%s1 + $0x830] sm:$0xff]
    %v317 = vld [vmem:[%s1 + $0x838] sm:$0xff]
    %v318 = vld [vmem:[%s1 + $0x840] sm:$0xff]
    %v319 = vld [vmem:[%s1 + $0x848] sm:$0xff]
    %v320 = vld [vmem:[%s1 + $0x850] sm:$0xff]
    %v321 = vld [vmem:[%s1 + $0x858] sm:$0xff]
    %v322 = vld [vmem:[%s1 + $0x860] sm:$0xff]
    %v323 = vld [vmem:[%s1 + $0x868] sm:$0xff]
    %v324 = vld [vmem:[%s1 + $0x870] sm:$0xff]
    %v325 = vld [vmem:[%s1 + $0x878] sm:$0xff]
    %v326 = vld [vmem:[%s1 + $0x880] sm:$0xff]
    %v327 = vld [vmem:[%s1 + $0x888] sm:$0xff]
    %v328 = vld [vmem:[%s1 + $0x890] sm:$0xff]
    %v329 = vld [vmem:[%s1 + $0x898] sm:$0xff]
    %v330 = vld [vmem:[%s1 + $0x8a0] sm:$0xff]
    %v331 = vld [vmem:[%s1 + $0x8a8] sm:$0xff]
    %v332 = vld [vmem:[%s1 + $0x8b0] sm:$0xff]
    %v333 = vld [vmem:[%s1 + $0x8b8] sm:$0xff]
    %v334 = vld [vmem:[%s1 + $0x8c0] sm:$0xff]
    %v335 = vld [vmem:[%s1 + $0x8c8] sm:$0xff]
    %v336 = vld [vmem:[%s1 + $0x8d0] sm:$0xff]
    %v337 = vld [vmem:[%s1 + $0x8d8] sm:$0xff]
    %v338 = vld [vmem:[%s1 + $0x8e0] sm:$0xff]
    %v339 = vld [vmem:[%s1 + $0x8e8] sm:$0xff]
    %v340 = vld [vmem:[%s1 + $0x8f0] sm:$0xff]
    %v341 = vld [vmem:[%s1 + $0x8f8] sm:$0xff]
    %v342 = vld [vmem:[%s1 + $0x900] sm:$0xff]
    %v343 = vld [vmem:[%s1 + $0x908] sm:$0xff]
    %v344 = vld [vmem:[%s1 + $0x910] sm:$0xff]
    %v345 = vld [vmem:[%s1 + $0x918] sm:$0xff]
    %v346 = vld [vmem:[%s1 + $0x920] sm:$0xff]
    %v347 = vld [vmem:[%s1 + $0x928] sm:$0xff]
    %v348 = vld [vmem:[%s1 + $0x930] sm:$0xff]
    %v349 = vld [vmem:[%s1 + $0x938] sm:$0xff]
    %v350 = vld [vmem:[%s1 + $0x940] sm:$0xff]
    %v351 = vld [vmem:[%s1 + $0x948] sm:$0xff]
    %v352 = vld [vmem:[%s1 + $0x950] sm:$0xff]
    %v353 = vld [vmem:[%s1 + $0x958] sm:$0xff]
    %v354 = vld [vmem:[%s1 + $0x960] sm:$0xff]
    %v355 = vld [vmem:[%s1 + $0x968] sm:$0xff]
    %v356 = vld [vmem:[%s1 + $0x970] sm:$0xff]
    %v357 = vld [vmem:[%s1 + $0x978] sm:$0xff]
    %v358 = vld [vmem:[%s1 + $0x980] sm:$0xff]
    %v359 = vld [vmem:[%s1 + $0x988] sm:$0xff]
    %v360 = vld [vmem:[%s1 + $0x990] sm:$0xff]
    %v361 = vld [vmem:[%s1 + $0x998] sm:$0xff]
    %v362 = vld [vmem:[%s1 + $0x9a0] sm:$0xff]
    %v363 = vld [vmem:[%s1 + $0x9a8] sm:$0xff]
    %v364 = vld [vmem:[%s1 + $0x9b0] sm:$0xff]
    %v365 = vld [vmem:[%s1 + $0x9b8] sm:$0xff]
    %v366 = vld [vmem:[%s1 + $0x9c0] sm:$0xff]
    %v367 = vld [vmem:[%s1 + $0x9c8] sm:$0xff]
    %v368 = vld [vmem:[%s1 + $0x9d0] sm:$0xff]
    %v369 = vld [vmem:[%s1 + $0x9d8] sm:$0xff]
    %v370 = vld [vmem:[%s1 + $0x9e0] sm:$0xff]
    %v371 = vld [vmem:[%s1 + $0x9e8] sm:$0xff]
    %v372 = vld [vmem:[%s1 + $0x9f0] sm:$0xff]
    %v373 = vld [vmem:[%s1 + $0x9f8] sm:$0xff]
    %v374 = vld [vmem:[%s1 + $0xa00] sm:$0xff]
    %v375 = vld [vmem:[%s1 + $0xa08] sm:$0xff]
    %v376 = vld [vmem:[%s1 + $0xa10] sm:$0xff]
    %v377 = vld [vmem:[%s1 + $0xa18] sm:$0xff]
    %v378 = vld [vmem:[%s1 + $0xa20] sm:$0xff]
    %v379 = vld [vmem:[%s1 + $0xa28] sm:$0xff]
    %v380 = vld [vmem:[%s1 + $0xa30] sm:$0xff]
    %v381 = vld [vmem:[%s1 + $0xa38] sm:$0xff]
    %v382 = vld [vmem:[%s1 + $0xa40] sm:$0xff]
    %v383 = vld [vmem:[%s1 + $0xa48] sm:$0xff]
    %v384 = vld [vmem:[%s1 + $0xa50] sm:$0xff]
    %v385 = vld [vmem:[%s1 + $0xa58] sm:$0xff]
    %v386 = vld [vmem:[%s1 + $0xa60] sm:$0xff]
    %v387 = vld [vmem:[%s1 + $0xa68] sm:$0xff]
    %v388 = vld [vmem:[%s1 + $0xa70] sm:$0xff]
    %v389 = vld [vmem:[%s1 + $0xa78] sm:$0xff]
    %v390 = vld [vmem:[%s1 + $0xa80] sm:$0xff]
    %v391 = vld [vmem:[%s1 + $0xa88] sm:$0xff]
    %v392 = vld [vmem:[%s1 + $0xa90] sm:$0xff]
    %v393 = vld [vmem:[%s1 + $0xa98] sm:$0xff]
    %v394 = vld [vmem:[%s1 + $0xaa0] sm:$0xff]
    %v395 = vld [vmem:[%s1 + $0xaa8] sm:$0xff]
    %v396 = vld [vmem:[%s1 + $0xab0] sm:$0xff]
    %v397 = vld [vmem:[%s1 + $0xab8] sm:$0xff]
    %v398 = vld [vmem:[%s1 + $0xac0] sm:$0xff]
    %v399 = vld [vmem:[%s1 + $0xac8] sm:$0xff]
    %v400 = vld [vmem:[%s1 + $0xad0] sm:$0xff]
    %v401 = vld [vmem:[%s1 + $0xad8] sm:$0xff]
    %v402 = vld [vmem:[%s1 + $0xae0] sm:$0xff]
    %v403 = vld [vmem:[%s1 + $0xae8] sm:$0xff]
    %v404 = vld [vmem:[%s1 + $0xaf0] sm:$0xff]
    %v405 = vld [vmem:[%s1 + $0xaf8] sm:$0xff]
    %v406 = vld [vmem:[%s1 + $0xb00] sm:$0xff]
    %v407 = vld [vmem:[%s1 + $0xb08] sm:$0xff]
    %v408 = vld [vmem:[%s1 + $0xb10] sm:$0xff]
    %v409 = vld [vmem:[%s1 + $0xb18] sm:$0xff]
    %v410 = vld [vmem:[%s1 + $0xb20] sm:$0xff]
    %v411 = vld [vmem:[%s1 + $0xb28] sm:$0xff]
    %v412 = vld [vmem:[%s1 + $0xb30] sm:$0xff]
    %v413 = vld [vmem:[%s1 + $0xb38] sm:$0xff]
    %v414 = vld [vmem:[%s1 + $0xb40] sm:$0xff]
    %v415 = vld [vmem:[%s1 + $0xb48] sm:$0xff]
    %v416 = vld [vmem:[%s1 + $0xb50] sm:$0xff]
    %v417 = vld [vmem:[%s1 + $0xb58] sm:$0xff]
    %v418 = vld [vmem:[%s1 + $0xb60] sm:$0xff]
    %v419 = vld [vmem:[%s1 + $0xb68] sm:$0xff]
    %v420 = vld [vmem:[%s1 + $0xb70] sm:$0xff]
    %v421 = vld [vmem:[%s1 + $0xb78] sm:$0xff]
    %v422 = vld [vmem:[%s1 + $0xb80] sm:$0xff]
    %v423 = vld [vmem:[%s1 + $0xb88] sm:$0xff]
    %v424 = vld [vmem:[%s1 + $0xb90] sm:$0xff]
    %v425 = vld [vmem:[%s1 + $0xb98] sm:$0xff]
    %v426 = vld [vmem:[%s1 + $0xba0] sm:$0xff]
    %v427 = vld [vmem:[%s1 + $0xba8] sm:$0xff]
    %v428 = vld [vmem:[%s1 + $0xbb0] sm:$0xff]
    %v429 = vld [vmem:[%s1 + $0xbb8] sm:$0xff]
    %v430 = vld [vmem:[%s1 + $0xbc0] sm:$0xff]
    %v431 = vld [vmem:[%s1 + $0xbc8] sm:$0xff]
    %v432 = vld [vmem:[%s1 + $0xbd0] sm:$0xff]
    %v433 = vld [vmem:[%s1 + $0xbd8] sm:$0xff]
    %v434 = vld [vmem:[%s1 + $0xbe0] sm:$0xff]
    %v435 = vld [vmem:[%s1 + $0xbe8] sm:$0xff]
    %v436 = vld [vmem:[%s1 + $0xbf0] sm:$0xff]
    %v437 = vld [vmem:[%s1 + $0xbf8] sm:$0xff]
    %v438 = vld [vmem:[%s1 + $0xc00] sm:$0xff]
    %v439 = vld [vmem:[%s1 + $0xc08] sm:$0xff]
    %v440 = vld [vmem:[%s1 + $0xc10] sm:$0xff]
    %v441 = vld [vmem:[%s1 + $0xc18] sm:$0xff]
    %v442 = vld [vmem:[%s1 + $0xc20] sm:$0xff]
    %v443 = vld [vmem:[%s1 + $0xc28] sm:$0xff]
    %v444 = vld [vmem:[%s1 + $0xc30] sm:$0xff]
    %v445 = vld [vmem:[%s1 + $0xc38] sm:$0xff]
    %v446 = vld [vmem:[%s2] sm:$0xf]
    %v448 = vlaneseq
    %v449 = vshrl.u32 %v448, 7
    %v450 = vsub.s32 0, %v449
    %v451 = vrot.slane %v446, %v450
    %v452 = vlaneseq
    %v453 = vshrl.u32 %v452, 7
    %v454 = vsub.s32 1, %v453
    %v455 = vrot.slane %v446, %v454
    %v456 = vlaneseq
    %v457 = vshrl.u32 %v456, 7
    %v458 = vsub.s32 2, %v457
    %v459 = vrot.slane %v446, %v458
    %v460 = vlaneseq
    %v461 = vshrl.u32 %v460, 7
    %v462 = vsub.s32 3, %v461
    %v463 = vrot.slane %v446, %v462
    %vm468 = vcmask 130048
    %v470 = vsel %vm468, %v53, 0
    %472 = vmatprep.subr.mxu0 %v55
    %473 = vmatpush1.msra.mxu0 %v54
    %474 = vmatprep.subr.mxu0 %v59
    %475 = vmatpush1.msra.mxu0 %v58
    %476 = vmatprep.subr.mxu0 %v63
    %477 = vmatpush1.msra.mxu0 %v62
    %478 = vmatprep.subr.mxu0 %v67
    %479 = vmatpush1.msra.mxu0 %v66
    %480 = vmatprep.subr.mxu0 %v71
    %481 = vmatpush1.msra.mxu0 %v70
    %482 = vmatprep.subr.mxu0 %v75
    %483 = vmatpush1.msra.mxu0 %v74
    %484 = vmatprep.subr.mxu0 %v79
    %485 = vmatpush1.msra.mxu0 %v78
    %486 = vmatprep.subr.mxu0 %v83
    %487 = vmatpush1.msra.mxu0 %v82
    %488 = vmatprep.subr.mxu0 %v87
    %489 = vmatpush1.msra.mxu0 %v86
    %490 = vmatprep.subr.mxu0 %v91
    %491 = vmatpush1.msra.mxu0 %v90
    %492 = vmatprep.subr.mxu0 %v95
    %493 = vmatpush1.msra.mxu0 %v94
    %494 = vmatprep.subr.mxu0 %v99
    %495 = vmatpush1.msra.mxu0 %v98
    %496 = vmatprep.subr.mxu0 %v103
    %497 = vmatpush1.msra.mxu0 %v102
    %498 = vmatprep.subr.mxu0 %v107
    %499 = vmatpush1.msra.mxu0 %v106
    %500 = vmatprep.subr.mxu0 %v111
    %501 = vmatpush1.msra.mxu0 %v110
    %502 = vmatprep.subr.mxu0 %v115
    %503 = vmatpush1.msra.mxu0 %v114
    %504 = vmatprep.subr.mxu0 %v119
    %505 = vmatpush1.msra.mxu0 %v118
    %506 = vmatprep.subr.mxu0 %v123
    %507 = vmatpush1.msra.mxu0 %v122
    %508 = vmatprep.subr.mxu0 %v127
    %509 = vmatpush1.msra.mxu0 %v126
    %510 = vmatprep.subr.mxu0 %v131
    %511 = vmatpush1.msra.mxu0 %v130
    %512 = vmatprep.subr.mxu0 %v135
    %513 = vmatpush1.msra.mxu0 %v134
    %514 = vmatprep.subr.mxu0 %v139
    %515 = vmatpush1.msra.mxu0 %v138
    %516 = vmatprep.subr.mxu0 %v143
    %517 = vmatpush1.msra.mxu0 %v142
    %518 = vmatprep.subr.mxu0 %v147
    %519 = vmatpush1.msra.mxu0 %v146
    %520 = vmatprep.subr.mxu0 %v151
    %521 = vmatpush1.msra.mxu0 %v150
    %522 = vmatprep.subr.mxu0 %v155
    %523 = vmatpush1.msra.mxu0 %v154
    %524 = vmatprep.subr.mxu0 %v159
    %525 = vmatpush1.msra.mxu0 %v158
    %526 = vmatprep.subr.mxu0 %v163
    %527 = vmatpush1.msra.mxu0 %v162
    %528 = vmatprep.subr.mxu0 %v167
    %529 = vmatpush1.msra.mxu0 %v166
    %530 = vmatprep.subr.mxu0 %v171
    %531 = vmatpush1.msra.mxu0 %v170
    %532 = vmatprep.subr.mxu0 %v175
    %533 = vmatpush1.msra.mxu0 %v174
    %534 = vmatprep.subr.mxu0 %v179
    %535 = vmatpush1.msra.mxu0 %v178
    %536 = vmatprep.mubr.f32.mxu0 %v48
    %537 = vmatmul.mubr.f32.gmra.mrb[0].mxu0 %v47
    %v538 = vpop.f32.mrb[0].mxu0
    %v539 = vadd.f32 %v451, %v538
    %v540 = vpop.f32.mrb[0].mxu0
    %v541 = vadd.f32 %v455, %v540
    %542 = vdwg.mxu0
    %543 = vmatprep.subr.mxu0 %v183
    %544 = vmatpush1.msra.mxu0 %v182
    %545 = vmatprep.subr.mxu0 %v187
    %546 = vmatpush1.msra.mxu0 %v186
    %547 = vmatprep.subr.mxu0 %v191
    %548 = vmatpush1.msra.mxu0 %v190
    %549 = vmatprep.subr.mxu0 %v195
    %550 = vmatpush1.msra.mxu0 %v194
    %551 = vmatprep.subr.mxu0 %v199
    %552 = vmatpush1.msra.mxu0 %v198
    %553 = vmatprep.subr.mxu0 %v203
    %554 = vmatpush1.msra.mxu0 %v202
    %555 = vmatprep.subr.mxu0 %v207
    %556 = vmatpush1.msra.mxu0 %v206
    %557 = vmatprep.subr.mxu0 %v211
    %558 = vmatpush1.msra.mxu0 %v210
    %559 = vmatprep.subr.mxu0 %v215
    %560 = vmatpush1.msra.mxu0 %v214
    %561 = vmatprep.subr.mxu0 %v219
    %562 = vmatpush1.msra.mxu0 %v218
    %563 = vmatprep.subr.mxu0 %v223
    %564 = vmatpush1.msra.mxu0 %v222
    %565 = vmatprep.subr.mxu0 %v227
    %566 = vmatpush1.msra.mxu0 %v226
    %567 = vmatprep.subr.mxu0 %v231
    %568 = vmatpush1.msra.mxu0 %v230
    %569 = vmatprep.subr.mxu0 %v235
    %570 = vmatpush1.msra.mxu0 %v234
    %571 = vmatprep.subr.mxu0 %v239
    %572 = vmatpush1.msra.mxu0 %v238
    %573 = vmatprep.subr.mxu0 %v243
    %574 = vmatpush1.msra.mxu0 %v242
    %575 = vmatprep.subr.mxu0 %v247
    %576 = vmatpush1.msra.mxu0 %v246
    %577 = vmatprep.subr.mxu0 %v251
    %578 = vmatpush1.msra.mxu0 %v250
    %579 = vmatprep.subr.mxu0 %v255
    %580 = vmatpush1.msra.mxu0 %v254
    %581 = vmatprep.subr.mxu0 %v259
    %582 = vmatpush1.msra.mxu0 %v258
    %583 = vmatprep.subr.mxu0 %v263
    %584 = vmatpush1.msra.mxu0 %v262
    %585 = vmatprep.subr.mxu0 %v267
    %586 = vmatpush1.msra.mxu0 %v266
    %587 = vmatprep.subr.mxu0 %v271
    %588 = vmatpush1.msra.mxu0 %v270
    %589 = vmatprep.subr.mxu0 %v275
    %590 = vmatpush1.msra.mxu0 %v274
    %591 = vmatprep.subr.mxu0 %v279
    %592 = vmatpush1.msra.mxu0 %v278
    %593 = vmatprep.subr.mxu0 %v283
    %594 = vmatpush1.msra.mxu0 %v282
    %595 = vmatprep.subr.mxu0 %v287
    %596 = vmatpush1.msra.mxu0 %v286
    %597 = vmatprep.subr.mxu0 %v291
    %598 = vmatpush1.msra.mxu0 %v290
    %599 = vmatprep.subr.mxu0 %v295
    %600 = vmatpush1.msra.mxu0 %v294
    %601 = vmatprep.subr.mxu0 %v299
    %602 = vmatpush1.msra.mxu0 %v298
    %603 = vmatprep.subr.mxu0 %v303
    %604 = vmatpush1.msra.mxu0 %v302
    %605 = vmatprep.subr.mxu0 %v307
    %606 = vmatpush1.msra.mxu0 %v306
    %607 = vmatprep.mubr.f32.mxu0 %v50
    %608 = vmatmul.mubr.f32.gmra.mrb[0].mxu0 %v49
    %v609 = vpop.f32.mrb[0].mxu0
    %v610 = vadd.f32 %v539, %v609
    %v611 = vpop.f32.mrb[0].mxu0
    %v612 = vadd.f32 %v541, %v611
    %613 = vdwg.mxu0
    %614 = vmatprep.subr.mxu0 %v311
    %615 = vmatpush1.msra.mxu0 %v310
    %616 = vmatprep.subr.mxu0 %v315
    %617 = vmatpush1.msra.mxu0 %v314
    %618 = vmatprep.subr.mxu0 %v319
    %619 = vmatpush1.msra.mxu0 %v318
    %620 = vmatprep.subr.mxu0 %v323
    %621 = vmatpush1.msra.mxu0 %v322
    %622 = vmatprep.subr.mxu0 %v327
    %623 = vmatpush1.msra.mxu0 %v326
    %624 = vmatprep.subr.mxu0 %v331
    %625 = vmatpush1.msra.mxu0 %v330
    %626 = vmatprep.subr.mxu0 %v335
    %627 = vmatpush1.msra.mxu0 %v334
    %628 = vmatprep.subr.mxu0 %v339
    %629 = vmatpush1.msra.mxu0 %v338
    %630 = vmatprep.subr.mxu0 %v343
    %631 = vmatpush1.msra.mxu0 %v342
    %632 = vmatprep.subr.mxu0 %v347
    %633 = vmatpush1.msra.mxu0 %v346
    %634 = vmatprep.subr.mxu0 %v351
    %635 = vmatpush1.msra.mxu0 %v350
    %636 = vmatprep.subr.mxu0 %v355
    %637 = vmatpush1.msra.mxu0 %v354
    %638 = vmatprep.subr.mxu0 %v359
    %639 = vmatpush1.msra.mxu0 %v358
    %640 = vmatprep.subr.mxu0 %v363
    %641 = vmatpush1.msra.mxu0 %v362
    %642 = vmatprep.subr.mxu0 %v367
    %643 = vmatpush1.msra.mxu0 %v366
    %644 = vmatprep.subr.mxu0 %v371
    %645 = vmatpush1.msra.mxu0 %v370
    %646 = vmatprep.subr.mxu0 %v375
    %647 = vmatpush1.msra.mxu0 %v374
    %648 = vmatprep.subr.mxu0 %v379
    %649 = vmatpush1.msra.mxu0 %v378
    %650 = vmatprep.subr.mxu0 %v383
    %651 = vmatpush1.msra.mxu0 %v382
    %652 = vmatprep.subr.mxu0 %v387
    %653 = vmatpush1.msra.mxu0 %v386
    %654 = vmatprep.subr.mxu0 %v391
    %655 = vmatpush1.msra.mxu0 %v390
    %656 = vmatprep.subr.mxu0 %v395
    %657 = vmatpush1.msra.mxu0 %v394
    %658 = vmatprep.subr.mxu0 %v399
    %659 = vmatpush1.msra.mxu0 %v398
    %660 = vmatprep.subr.mxu0 %v403
    %661 = vmatpush1.msra.mxu0 %v402
    %662 = vmatprep.subr.mxu0 %v407
    %663 = vmatpush1.msra.mxu0 %v406
    %664 = vmatprep.subr.mxu0 %v411
    %665 = vmatpush1.msra.mxu0 %v410
    %666 = vmatprep.subr.mxu0 %v415
    %667 = vmatpush1.msra.mxu0 %v414
    %668 = vmatprep.subr.mxu0 %v419
    %669 = vmatpush1.msra.mxu0 %v418
    %670 = vmatprep.subr.mxu0 %v423
    %671 = vmatpush1.msra.mxu0 %v422
    %672 = vmatprep.subr.mxu0 %v427
    %673 = vmatpush1.msra.mxu0 %v426
    %674 = vmatprep.subr.mxu0 %v431
    %675 = vmatpush1.msra.mxu0 %v430
    %676 = vmatprep.subr.mxu0 %v435
    %677 = vmatpush1.msra.mxu0 %v434
    %678 = vmatprep.mubr.f32.mxu0 %v52
    %679 = vmatmul.mubr.f32.gmra.mrb[0].mxu0 %v51
    %v680 = vpop.f32.mrb[0].mxu0
    %v681 = vadd.f32 %v610, %v680
    %v682 = vpop.f32.mrb[0].mxu0
    %v683 = vadd.f32 %v612, %v682
    %684 = vdwg.mxu0
    %685 = vmatprep.subr.mxu0 %v439
    %686 = vmatpush1.msra.mxu0 %v438
    %687 = vmatprep.subr.mxu0 %v443
    %688 = vmatpush1.msra.mxu0 %v442
    %689 = vmatprep.subr.mxu0 0.0
    %690 = vmatpush1.msra.mxu0 0.0
    %691 = vmatprep.subr.mxu0 0.0
    %692 = vmatpush1.msra.mxu0 0.0
    %693 = vmatprep.subr.mxu0 0.0
    %694 = vmatpush1.msra.mxu0 0.0
    %695 = vmatprep.subr.mxu0 0.0
    %696 = vmatpush1.msra.mxu0 0.0
    %697 = vmatprep.subr.mxu0 0.0
    %698 = vmatpush1.msra.mxu0 0.0
    %699 = vmatprep.subr.mxu0 0.0
    %700 = vmatpush1.msra.mxu0 0.0
    %701 = vmatprep.subr.mxu0 0.0
    %702 = vmatpush1.msra.mxu0 0.0
    %703 = vmatprep.subr.mxu0 0.0
    %704 = vmatpush1.msra.mxu0 0.0
    %705 = vmatprep.subr.mxu0 0.0
    %706 = vmatpush1.msra.mxu0 0.0
    %707 = vmatprep.subr.mxu0 0.0
    %708 = vmatpush1.msra.mxu0 0.0
    %709 = vmatprep.subr.mxu0 0.0
    %710 = vmatpush1.msra.mxu0 0.0
    %711 = vmatprep.subr.mxu0 0.0
    %712 = vmatpush1.msra.mxu0 0.0
    %713 = vmatprep.subr.mxu0 0.0
    %714 = vmatpush1.msra.mxu0 0.0
    %715 = vmatprep.subr.mxu0 0.0
    %716 = vmatpush1.msra.mxu0 0.0
    %717 = vmatprep.subr.mxu0 0.0
    %718 = vmatpush1.msra.mxu0 0.0
    %719 = vmatprep.subr.mxu0 0.0
    %720 = vmatpush1.msra.mxu0 0.0
    %721 = vmatprep.subr.mxu0 0.0
    %722 = vmatpush1.msra.mxu0 0.0
    %723 = vmatprep.subr.mxu0 0.0
    %724 = vmatpush1.msra.mxu0 0.0
    %725 = vmatprep.subr.mxu0 0.0
    %726 = vmatpush1.msra.mxu0 0.0
    %727 = vmatprep.subr.mxu0 0.0
    %728 = vmatpush1.msra.mxu0 0.0
    %729 = vmatprep.subr.mxu0 0.0
    %730 = vmatpush1.msra.mxu0 0.0
    %731 = vmatprep.subr.mxu0 0.0
    %732 = vmatpush1.msra.mxu0 0.0
    %733 = vmatprep.subr.mxu0 0.0
    %734 = vmatpush1.msra.mxu0 0.0
    %735 = vmatprep.subr.mxu0 0.0
    %736 = vmatpush1.msra.mxu0 0.0
    %737 = vmatprep.subr.mxu0 0.0
    %738 = vmatpush1.msra.mxu0 0.0
    %739 = vmatprep.subr.mxu0 0.0
    %740 = vmatpush1.msra.mxu0 0.0
    %741 = vmatprep.subr.mxu0 0.0
    %742 = vmatpush1.msra.mxu0 0.0
    %743 = vmatprep.subr.mxu0 0.0
    %744 = vmatpush1.msra.mxu0 0.0
    %745 = vmatprep.subr.mxu0 0.0
    %746 = vmatpush1.msra.mxu0 0.0
    %747 = vmatprep.subr.mxu0 0.0
    %748 = vmatpush1.msra.mxu0 0.0
    %749 = vmatprep.mubr.f32.mxu0 0.0
    %750 = vmatmul.mubr.f32.gmra.mrb[0].mxu0 %v470
    %v751 = vpop.f32.mrb[0].mxu0
    %v752 = vadd.f32 %v681, %v751
    %v753 = vpop.f32.mrb[0].mxu0
    %v754 = vadd.f32 %v683, %v753
    %755 = vdwg.mxu0
    %756 = vmatprep.subr.mxu0 %v57
    %757 = vmatpush1.msra.mxu0 %v56
    %758 = vmatprep.subr.mxu0 %v61
    %759 = vmatpush1.msra.mxu0 %v60
    %760 = vmatprep.subr.mxu0 %v65
    %761 = vmatpush1.msra.mxu0 %v64
    %762 = vmatprep.subr.mxu0 %v69
    %763 = vmatpush1.msra.mxu0 %v68
    %764 = vmatprep.subr.mxu0 %v73
    %765 = vmatpush1.msra.mxu0 %v72
    %766 = vmatprep.subr.mxu0 %v77
    %767 = vmatpush1.msra.mxu0 %v76
    %768 = vmatprep.subr.mxu0 %v81
    %769 = vmatpush1.msra.mxu0 %v80
    %770 = vmatprep.subr.mxu0 %v85
    %771 = vmatpush1.msra.mxu0 %v84
    %772 = vmatprep.subr.mxu0 %v89
    %773 = vmatpush1.msra.mxu0 %v88
    %774 = vmatprep.subr.mxu0 %v93
    %775 = vmatpush1.msra.mxu0 %v92
    %776 = vmatprep.subr.mxu0 %v97
    %777 = vmatpush1.msra.mxu0 %v96
    %778 = vmatprep.subr.mxu0 %v101
    %779 = vmatpush1.msra.mxu0 %v100
    %780 = vmatprep.subr.mxu0 %v105
    %781 = vmatpush1.msra.mxu0 %v104
    %782 = vmatprep.subr.mxu0 %v109
    %783 = vmatpush1.msra.mxu0 %v108
    %784 = vmatprep.subr.mxu0 %v113
    %785 = vmatpush1.msra.mxu0 %v112
    %786 = vmatprep.subr.mxu0 %v117
    %787 = vmatpush1.msra.mxu0 %v116
    %788 = vmatprep.subr.mxu0 %v121
    %789 = vmatpush1.msra.mxu0 %v120
    %790 = vmatprep.subr.mxu0 %v125
    %791 = vmatpush1.msra.mxu0 %v124
    %792 = vmatprep.subr.mxu0 %v129
    %793 = vmatpush1.msra.mxu0 %v128
    %794 = vmatprep.subr.mxu0 %v133
    %795 = vmatpush1.msra.mxu0 %v132
    %796 = vmatprep.subr.mxu0 %v137
    %797 = vmatpush1.msra.mxu0 %v136
    %798 = vmatprep.subr.mxu0 %v141
    %799 = vmatpush1.msra.mxu0 %v140
    %800 = vmatprep.subr.mxu0 %v145
    %801 = vmatpush1.msra.mxu0 %v144
    %802 = vmatprep.subr.mxu0 %v149
    %803 = vmatpush1.msra.mxu0 %v148
    %804 = vmatprep.subr.mxu0 %v153
    %805 = vmatpush1.msra.mxu0 %v152
    %806 = vmatprep.subr.mxu0 %v157
    %807 = vmatpush1.msra.mxu0 %v156
    %808 = vmatprep.subr.mxu0 %v161
    %809 = vmatpush1.msra.mxu0 %v160
    %810 = vmatprep.subr.mxu0 %v165
    %811 = vmatpush1.msra.mxu0 %v164
    %812 = vmatprep.subr.mxu0 %v169
    %813 = vmatpush1.msra.mxu0 %v168
    %814 = vmatprep.subr.mxu0 %v173
    %815 = vmatpush1.msra.mxu0 %v172
    %816 = vmatprep.subr.mxu0 %v177
    %817 = vmatpush1.msra.mxu0 %v176
    %818 = vmatprep.subr.mxu0 %v181
    %819 = vmatpush1.msra.mxu0 %v180
    %820 = vmatprep.mubr.f32.mxu0 %v48
    %821 = vmatmul.mubr.f32.gmra.mrb[0].mxu0 %v47
    %v822 = vpop.f32.mrb[0].mxu0
    %v823 = vadd.f32 %v459, %v822
    %v824 = vpop.f32.mrb[0].mxu0
    %v825 = vadd.f32 %v463, %v824
    %826 = vdwg.mxu0
    %827 = vmatprep.subr.mxu0 %v185
    %828 = vmatpush1.msra.mxu0 %v184
    %829 = vmatprep.subr.mxu0 %v189
    %830 = vmatpush1.msra.mxu0 %v188
    %831 = vmatprep.subr.mxu0 %v193
    %832 = vmatpush1.msra.mxu0 %v192
    %833 = vmatprep.subr.mxu0 %v197
    %834 = vmatpush1.msra.mxu0 %v196
    %835 = vmatprep.subr.mxu0 %v201
    %836 = vmatpush1.msra.mxu0 %v200
    %837 = vmatprep.subr.mxu0 %v205
    %838 = vmatpush1.msra.mxu0 %v204
    %839 = vmatprep.subr.mxu0 %v209
    %840 = vmatpush1.msra.mxu0 %v208
    %841 = vmatprep.subr.mxu0 %v213
    %842 = vmatpush1.msra.mxu0 %v212
    %843 = vmatprep.subr.mxu0 %v217
    %844 = vmatpush1.msra.mxu0 %v216
    %845 = vmatprep.subr.mxu0 %v221
    %846 = vmatpush1.msra.mxu0 %v220
    %847 = vmatprep.subr.mxu0 %v225
    %848 = vmatpush1.msra.mxu0 %v224
    %849 = vmatprep.subr.mxu0 %v229
    %850 = vmatpush1.msra.mxu0 %v228
    %851 = vmatprep.subr.mxu0 %v233
    %852 = vmatpush1.msra.mxu0 %v232
    %853 = vmatprep.subr.mxu0 %v237
    %854 = vmatpush1.msra.mxu0 %v236
    %855 = vmatprep.subr.mxu0 %v241
    %856 = vmatpush1.msra.mxu0 %v240
    %857 = vmatprep.subr.mxu0 %v245
    %858 = vmatpush1.msra.mxu0 %v244
    %859 = vmatprep.subr.mxu0 %v249
    %860 = vmatpush1.msra.mxu0 %v248
    %861 = vmatprep.subr.mxu0 %v253
    %862 = vmatpush1.msra.mxu0 %v252
    %863 = vmatprep.subr.mxu0 %v257
    %864 = vmatpush1.msra.mxu0 %v256
    %865 = vmatprep.subr.mxu0 %v261
    %866 = vmatpush1.msra.mxu0 %v260
    %867 = vmatprep.subr.mxu0 %v265
    %868 = vmatpush1.msra.mxu0 %v264
    %869 = vmatprep.subr.mxu0 %v269
    %870 = vmatpush1.msra.mxu0 %v268
    %871 = vmatprep.subr.mxu0 %v273
    %872 = vmatpush1.msra.mxu0 %v272
    %873 = vmatprep.subr.mxu0 %v277
    %874 = vmatpush1.msra.mxu0 %v276
    %875 = vmatprep.subr.mxu0 %v281
    %876 = vmatpush1.msra.mxu0 %v280
    %877 = vmatprep.subr.mxu0 %v285
    %878 = vmatpush1.msra.mxu0 %v284
    %879 = vmatprep.subr.mxu0 %v289
    %880 = vmatpush1.msra.mxu0 %v288
    %881 = vmatprep.subr.mxu0 %v293
    %882 = vmatpush1.msra.mxu0 %v292
    %883 = vmatprep.subr.mxu0 %v297
    %884 = vmatpush1.msra.mxu0 %v296
    %885 = vmatprep.subr.mxu0 %v301
    %886 = vmatpush1.msra.mxu0 %v300
    %887 = vmatprep.subr.mxu0 %v305
    %888 = vmatpush1.msra.mxu0 %v304
    %889 = vmatprep.subr.mxu0 %v309
    %890 = vmatpush1.msra.mxu0 %v308
    %891 = vmatprep.mubr.f32.mxu0 %v50
    %892 = vmatmul.mubr.f32.gmra.mrb[0].mxu0 %v49
    %v893 = vpop.f32.mrb[0].mxu0
    %v894 = vadd.f32 %v823, %v893
    %v895 = vpop.f32.mrb[0].mxu0
    %v896 = vadd.f32 %v825, %v895
    %897 = vdwg.mxu0
    %898 = vmatprep.subr.mxu0 %v313
    %899 = vmatpush1.msra.mxu0 %v312
    %900 = vmatprep.subr.mxu0 %v317
    %901 = vmatpush1.msra.mxu0 %v316
    %902 = vmatprep.subr.mxu0 %v321
    %903 = vmatpush1.msra.mxu0 %v320
    %904 = vmatprep.subr.mxu0 %v325
    %905 = vmatpush1.msra.mxu0 %v324
    %906 = vmatprep.subr.mxu0 %v329
    %907 = vmatpush1.msra.mxu0 %v328
    %908 = vmatprep.subr.mxu0 %v333
    %909 = vmatpush1.msra.mxu0 %v332
    %910 = vmatprep.subr.mxu0 %v337
    %911 = vmatpush1.msra.mxu0 %v336
    %912 = vmatprep.subr.mxu0 %v341
    %913 = vmatpush1.msra.mxu0 %v340
    %914 = vmatprep.subr.mxu0 %v345
    %915 = vmatpush1.msra.mxu0 %v344
    %916 = vmatprep.subr.mxu0 %v349
    %917 = vmatpush1.msra.mxu0 %v348
    %918 = vmatprep.subr.mxu0 %v353
    %919 = vmatpush1.msra.mxu0 %v352
    %920 = vmatprep.subr.mxu0 %v357
    %921 = vmatpush1.msra.mxu0 %v356
    %922 = vmatprep.subr.mxu0 %v361
    %923 = vmatpush1.msra.mxu0 %v360
    %924 = vmatprep.subr.mxu0 %v365
    %925 = vmatpush1.msra.mxu0 %v364
    %926 = vmatprep.subr.mxu0 %v369
    %927 = vmatpush1.msra.mxu0 %v368
    %928 = vmatprep.subr.mxu0 %v373
    %929 = vmatpush1.msra.mxu0 %v372
    %930 = vmatprep.subr.mxu0 %v377
    %931 = vmatpush1.msra.mxu0 %v376
    %932 = vmatprep.subr.mxu0 %v381
    %933 = vmatpush1.msra.mxu0 %v380
    %934 = vmatprep.subr.mxu0 %v385
    %935 = vmatpush1.msra.mxu0 %v384
    %936 = vmatprep.subr.mxu0 %v389
    %937 = vmatpush1.msra.mxu0 %v388
    %938 = vmatprep.subr.mxu0 %v393
    %939 = vmatpush1.msra.mxu0 %v392
    %940 = vmatprep.subr.mxu0 %v397
    %941 = vmatpush1.msra.mxu0 %v396
    %942 = vmatprep.subr.mxu0 %v401
    %943 = vmatpush1.msra.mxu0 %v400
    %944 = vmatprep.subr.mxu0 %v405
    %945 = vmatpush1.msra.mxu0 %v404
    %946 = vmatprep.subr.mxu0 %v409
    %947 = vmatpush1.msra.mxu0 %v408
    %948 = vmatprep.subr.mxu0 %v413
    %949 = vmatpush1.msra.mxu0 %v412
    %950 = vmatprep.subr.mxu0 %v417
    %951 = vmatpush1.msra.mxu0 %v416
    %952 = vmatprep.subr.mxu0 %v421
    %953 = vmatpush1.msra.mxu0 %v420
    %954 = vmatprep.subr.mxu0 %v425
    %955 = vmatpush1.msra.mxu0 %v424
    %956 = vmatprep.subr.mxu0 %v429
    %957 = vmatpush1.msra.mxu0 %v428
    %958 = vmatprep.subr.mxu0 %v433
    %959 = vmatpush1.msra.mxu0 %v432
    %960 = vmatprep.subr.mxu0 %v437
    %961 = vmatpush1.msra.mxu0 %v436
    %962 = vmatprep.mubr.f32.mxu0 %v52
    %963 = vmatmul.mubr.f32.gmra.mrb[0].mxu0 %v51
    %v964 = vpop.f32.mrb[0].mxu0
    %v965 = vadd.f32 %v894, %v964
    %v966 = vpop.f32.mrb[0].mxu0
    %v967 = vadd.f32 %v896, %v966
    %968 = vdwg.mxu0
    %969 = vmatprep.subr.mxu0 %v441
    %970 = vmatpush1.msra.mxu0 %v440
    %971 = vmatprep.subr.mxu0 %v445
    %972 = vmatpush1.msra.mxu0 %v444
    %973 = vmatprep.subr.mxu0 0.0
    %974 = vmatpush1.msra.mxu0 0.0
    %975 = vmatprep.subr.mxu0 0.0
    %976 = vmatpush1.msra.mxu0 0.0
    %977 = vmatprep.subr.mxu0 0.0
    %978 = vmatpush1.msra.mxu0 0.0
    %979 = vmatprep.subr.mxu0 0.0
    %980 = vmatpush1.msra.mxu0 0.0
    %981 = vmatprep.subr.mxu0 0.0
    %982 = vmatpush1.msra.mxu0 0.0
    %983 = vmatprep.subr.mxu0 0.0
    %984 = vmatpush1.msra.mxu0 0.0
    %985 = vmatprep.subr.mxu0 0.0
    %986 = vmatpush1.msra.mxu0 0.0
    %987 = vmatprep.subr.mxu0 0.0
    %988 = vmatpush1.msra.mxu0 0.0
    %989 = vmatprep.subr.mxu0 0.0
    %990 = vmatpush1.msra.mxu0 0.0
    %991 = vmatprep.subr.mxu0 0.0
    %992 = vmatpush1.msra.mxu0 0.0
    %993 = vmatprep.subr.mxu0 0.0
    %994 = vmatpush1.msra.mxu0 0.0
    %995 = vmatprep.subr.mxu0 0.0
    %996 = vmatpush1.msra.mxu0 0.0
    %997 = vmatprep.subr.mxu0 0.0
    %998 = vmatpush1.msra.mxu0 0.0
    %999 = vmatprep.subr.mxu0 0.0
    %1000 = vmatpush1.msra.mxu0 0.0
    %1001 = vmatprep.subr.mxu0 0.0
    %1002 = vmatpush1.msra.mxu0 0.0
    %1003 = vmatprep.subr.mxu0 0.0
    %1004 = vmatpush1.msra.mxu0 0.0
    %1005 = vmatprep.subr.mxu0 0.0
    %1006 = vmatpush1.msra.mxu0 0.0
    %1007 = vmatprep.subr.mxu0 0.0
    %1008 = vmatpush1.msra.mxu0 0.0
    %1009 = vmatprep.subr.mxu0 0.0
    %1010 = vmatpush1.msra.mxu0 0.0
    %1011 = vmatprep.subr.mxu0 0.0
    %1012 = vmatpush1.msra.mxu0 0.0
    %1013 = vmatprep.subr.mxu0 0.0
    %1014 = vmatpush1.msra.mxu0 0.0
    %1015 = vmatprep.subr.mxu0 0.0
    %1016 = vmatpush1.msra.mxu0 0.0
    %1017 = vmatprep.subr.mxu0 0.0
    %1018 = vmatpush1.msra.mxu0 0.0
    %1019 = vmatprep.subr.mxu0 0.0
    %1020 = vmatpush1.msra.mxu0 0.0
    %1021 = vmatprep.subr.mxu0 0.0
    %1022 = vmatpush1.msra.mxu0 0.0
    %1023 = vmatprep.subr.mxu0 0.0
    %1024 = vmatpush1.msra.mxu0 0.0
    %1025 = vmatprep.subr.mxu0 0.0
    %1026 = vmatpush1.msra.mxu0 0.0
    %1027 = vmatprep.subr.mxu0 0.0
    %1028 = vmatpush1.msra.mxu0 0.0
    %1029 = vmatprep.subr.mxu0 0.0
    %1030 = vmatpush1.msra.mxu0 0.0
    %1031 = vmatprep.subr.mxu0 0.0
    %1032 = vmatpush1.msra.mxu0 0.0
    %1033 = vmatprep.mubr.f32.mxu0 0.0
    %1034 = vmatmul.mubr.f32.gmra.mrb[0].mxu0 %v470
    %v1035 = vpop.f32.mrb[0].mxu0
    %v1036 = vadd.f32 %v965, %v1035
    %v1037 = vpop.f32.mrb[0].mxu0
    %v1038 = vadd.f32 %v967, %v1037
    %1039 = vdwg.mxu0
    %v1040 = vmax.f32 %v752, 0.0
    %v1041 = vmax.f32 %v754, 0.0
    %v1042 = vmax.f32 %v1036, 0.0
    %v1043 = vmax.f32 %v1038, 0.0
    %v1044 = vld [vmem:[%s3] sm:$0xff]
    %v1045 = vld [vmem:[%s3 + $0x8] sm:$0xff]
    %v1046 = vld [vmem:[%s3 + $0x10] sm:$0xff]
    %v1047 = vld [vmem:[%s3 + $0x18] sm:$0xff]
    %v1048 = vld [vmem:[%s3 + $0x20] sm:$0xff]
    %v1049 = vld [vmem:[%s3 + $0x28] sm:$0xff]
    %v1050 = vld [vmem:[%s3 + $0x30] sm:$0xff]
    %v1051 = vld [vmem:[%s3 + $0x38] sm:$0xff]
    %v1052 = vld [vmem:[%s3 + $0x40] sm:$0xff]
    %v1053 = vld [vmem:[%s3 + $0x48] sm:$0xff]
    %v1054 = vld [vmem:[%s3 + $0x50] sm:$0xff]
    %v1055 = vld [vmem:[%s3 + $0x58] sm:$0xff]
    %v1056 = vld [vmem:[%s3 + $0x60] sm:$0xff]
    %v1057 = vld [vmem:[%s3 + $0x68] sm:$0xff]
    %v1058 = vld [vmem:[%s3 + $0x70] sm:$0xff]
    %v1059 = vld [vmem:[%s3 + $0x78] sm:$0xff]
    %v1060 = vld [vmem:[%s3 + $0x80] sm:$0xff]
    %v1061 = vld [vmem:[%s3 + $0x88] sm:$0xff]
    %v1062 = vld [vmem:[%s3 + $0x90] sm:$0xff]
    %v1063 = vld [vmem:[%s3 + $0x98] sm:$0xff]
    %v1064 = vld [vmem:[%s3 + $0xa0] sm:$0xff]
    %v1065 = vld [vmem:[%s3 + $0xa8] sm:$0xff]
    %v1066 = vld [vmem:[%s3 + $0xb0] sm:$0xff]
    %v1067 = vld [vmem:[%s3 + $0xb8] sm:$0xff]
    %v1068 = vld [vmem:[%s3 + $0xc0] sm:$0xff]
    %v1069 = vld [vmem:[%s3 + $0xc8] sm:$0xff]
    %v1070 = vld [vmem:[%s3 + $0xd0] sm:$0xff]
    %v1071 = vld [vmem:[%s3 + $0xd8] sm:$0xff]
    %v1072 = vld [vmem:[%s3 + $0xe0] sm:$0xff]
    %v1073 = vld [vmem:[%s3 + $0xe8] sm:$0xff]
    %v1074 = vld [vmem:[%s3 + $0xf0] sm:$0xff]
    %v1075 = vld [vmem:[%s3 + $0xf8] sm:$0xff]
    %v1076 = vld [vmem:[%s3 + $0x100] sm:$0xff]
    %v1077 = vld [vmem:[%s3 + $0x108] sm:$0xff]
    %v1078 = vld [vmem:[%s3 + $0x110] sm:$0xff]
    %v1079 = vld [vmem:[%s3 + $0x118] sm:$0xff]
    %v1080 = vld [vmem:[%s3 + $0x120] sm:$0xff]
    %v1081 = vld [vmem:[%s3 + $0x128] sm:$0xff]
    %v1082 = vld [vmem:[%s3 + $0x130] sm:$0xff]
    %v1083 = vld [vmem:[%s3 + $0x138] sm:$0xff]
    %v1084 = vld [vmem:[%s3 + $0x140] sm:$0xff]
    %v1085 = vld [vmem:[%s3 + $0x148] sm:$0xff]
    %v1086 = vld [vmem:[%s3 + $0x150] sm:$0xff]
    %v1087 = vld [vmem:[%s3 + $0x158] sm:$0xff]
    %v1088 = vld [vmem:[%s3 + $0x160] sm:$0xff]
    %v1089 = vld [vmem:[%s3 + $0x168] sm:$0xff]
    %v1090 = vld [vmem:[%s3 + $0x170] sm:$0xff]
    %v1091 = vld [vmem:[%s3 + $0x178] sm:$0xff]
    %v1092 = vld [vmem:[%s3 + $0x180] sm:$0xff]
    %v1093 = vld [vmem:[%s3 + $0x188] sm:$0xff]
    %v1094 = vld [vmem:[%s4] sm:$0x1]
    %v1096 = vlaneseq
    %v1097 = vshrl.u32 %v1096, 7
    %v1098 = vsub.s32 0, %v1097
    %v1099 = vrot.slane %v1094, %v1098
    %v1102 = vsel %vm468, %v1043, 0
    %1104 = vmatprep.subr.mxu0 0.0
    %1105 = vmatpush1.msra.mxu0 %v1044
    %1106 = vmatprep.subr.mxu0 0.0
    %1107 = vmatpush1.msra.mxu0 %v1045
    %1108 = vmatprep.subr.mxu0 0.0
    %1109 = vmatpush1.msra.mxu0 %v1046
    %1110 = vmatprep.subr.mxu0 0.0
    %1111 = vmatpush1.msra.mxu0 %v1047
    %1112 = vmatprep.subr.mxu0 0.0
    %1113 = vmatpush1.msra.mxu0 %v1048
    %1114 = vmatprep.subr.mxu0 0.0
    %1115 = vmatpush1.msra.mxu0 %v1049
    %1116 = vmatprep.subr.mxu0 0.0
    %1117 = vmatpush1.msra.mxu0 %v1050
    %1118 = vmatprep.subr.mxu0 0.0
    %1119 = vmatpush1.msra.mxu0 %v1051
    %1120 = vmatprep.subr.mxu0 0.0
    %1121 = vmatpush1.msra.mxu0 %v1052
    %1122 = vmatprep.subr.mxu0 0.0
    %1123 = vmatpush1.msra.mxu0 %v1053
    %1124 = vmatprep.subr.mxu0 0.0
    %1125 = vmatpush1.msra.mxu0 %v1054
    %1126 = vmatprep.subr.mxu0 0.0
    %1127 = vmatpush1.msra.mxu0 %v1055
    %1128 = vmatprep.subr.mxu0 0.0
    %1129 = vmatpush1.msra.mxu0 %v1056
    %1130 = vmatprep.subr.mxu0 0.0
    %1131 = vmatpush1.msra.mxu0 %v1057
    %1132 = vmatprep.subr.mxu0 0.0
    %1133 = vmatpush1.msra.mxu0 %v1058
    %1134 = vmatprep.subr.mxu0 0.0
    %1135 = vmatpush1.msra.mxu0 %v1059
    %1136 = vmatprep.subr.mxu0 0.0
    %1137 = vmatpush1.msra.mxu0 %v1060
    %1138 = vmatprep.subr.mxu0 0.0
    %1139 = vmatpush1.msra.mxu0 %v1061
    %1140 = vmatprep.subr.mxu0 0.0
    %1141 = vmatpush1.msra.mxu0 %v1062
    %1142 = vmatprep.subr.mxu0 0.0
    %1143 = vmatpush1.msra.mxu0 %v1063
    %1144 = vmatprep.subr.mxu0 0.0
    %1145 = vmatpush1.msra.mxu0 %v1064
    %1146 = vmatprep.subr.mxu0 0.0
    %1147 = vmatpush1.msra.mxu0 %v1065
    %1148 = vmatprep.subr.mxu0 0.0
    %1149 = vmatpush1.msra.mxu0 %v1066
    %1150 = vmatprep.subr.mxu0 0.0
    %1151 = vmatpush1.msra.mxu0 %v1067
    %1152 = vmatprep.subr.mxu0 0.0
    %1153 = vmatpush1.msra.mxu0 %v1068
    %1154 = vmatprep.subr.mxu0 0.0
    %1155 = vmatpush1.msra.mxu0 %v1069
    %1156 = vmatprep.subr.mxu0 0.0
    %1157 = vmatpush1.msra.mxu0 %v1070
    %1158 = vmatprep.subr.mxu0 0.0
    %1159 = vmatpush1.msra.mxu0 %v1071
    %1160 = vmatprep.subr.mxu0 0.0
    %1161 = vmatpush1.msra.mxu0 %v1072
    %1162 = vmatprep.subr.mxu0 0.0
    %1163 = vmatpush1.msra.mxu0 %v1073
    %1164 = vmatprep.subr.mxu0 0.0
    %1165 = vmatpush1.msra.mxu0 %v1074
    %1166 = vmatprep.subr.mxu0 0.0
    %1167 = vmatpush1.msra.mxu0 %v1075
    %1168 = vmatprep.mubr.f32.mxu0 %v1041
    %1169 = vmatmul.mubr.f32.gmra.mrb[0].mxu0 %v1040
    %v1170 = vpop.f32.mrb[0].mxu0
    %v1171 = vadd.f32 %v1099, %v1170
    %v1172 = vpop.f32.mrb[0].mxu0
    %1173 = vdwg.mxu0
    %1174 = vmatprep.subr.mxu0 0.0
    %1175 = vmatpush1.msra.mxu0 %v1076
    %1176 = vmatprep.subr.mxu0 0.0
    %1177 = vmatpush1.msra.mxu0 %v1077
    %1178 = vmatprep.subr.mxu0 0.0
    %1179 = vmatpush1.msra.mxu0 %v1078
    %1180 = vmatprep.subr.mxu0 0.0
    %1181 = vmatpush1.msra.mxu0 %v1079
    %1182 = vmatprep.subr.mxu0 0.0
    %1183 = vmatpush1.msra.mxu0 %v1080
    %1184 = vmatprep.subr.mxu0 0.0
    %1185 = vmatpush1.msra.mxu0 %v1081
    %1186 = vmatprep.subr.mxu0 0.0
    %1187 = vmatpush1.msra.mxu0 %v1082
    %1188 = vmatprep.subr.mxu0 0.0
    %1189 = vmatpush1.msra.mxu0 %v1083
    %1190 = vmatprep.subr.mxu0 0.0
    %1191 = vmatpush1.msra.mxu0 %v1084
    %1192 = vmatprep.subr.mxu0 0.0
    %1193 = vmatpush1.msra.mxu0 %v1085
    %1194 = vmatprep.subr.mxu0 0.0
    %1195 = vmatpush1.msra.mxu0 %v1086
    %1196 = vmatprep.subr.mxu0 0.0
    %1197 = vmatpush1.msra.mxu0 %v1087
    %1198 = vmatprep.subr.mxu0 0.0
    %1199 = vmatpush1.msra.mxu0 %v1088
    %1200 = vmatprep.subr.mxu0 0.0
    %1201 = vmatpush1.msra.mxu0 %v1089
    %1202 = vmatprep.subr.mxu0 0.0
    %1203 = vmatpush1.msra.mxu0 %v1090
    %1204 = vmatprep.subr.mxu0 0.0
    %1205 = vmatpush1.msra.mxu0 %v1091
    %1206 = vmatprep.subr.mxu0 0.0
    %1207 = vmatpush1.msra.mxu0 %v1092
    %1208 = vmatprep.subr.mxu0 0.0
    %1209 = vmatpush1.msra.mxu0 %v1093
    %1210 = vmatprep.subr.mxu0 0.0
    %1211 = vmatpush1.msra.mxu0 0.0
    %1212 = vmatprep.subr.mxu0 0.0
    %1213 = vmatpush1.msra.mxu0 0.0
    %1214 = vmatprep.subr.mxu0 0.0
    %1215 = vmatpush1.msra.mxu0 0.0
    %1216 = vmatprep.subr.mxu0 0.0
    %1217 = vmatpush1.msra.mxu0 0.0
    %1218 = vmatprep.subr.mxu0 0.0
    %1219 = vmatpush1.msra.mxu0 0.0
    %1220 = vmatprep.subr.mxu0 0.0
    %1221 = vmatpush1.msra.mxu0 0.0
    %1222 = vmatprep.subr.mxu0 0.0
    %1223 = vmatpush1.msra.mxu0 0.0
    %1224 = vmatprep.subr.mxu0 0.0
    %1225 = vmatpush1.msra.mxu0 0.0
    %1226 = vmatprep.subr.mxu0 0.0
    %1227 = vmatpush1.msra.mxu0 0.0
    %1228 = vmatprep.subr.mxu0 0.0
    %1229 = vmatpush1.msra.mxu0 0.0
    %1230 = vmatprep.subr.mxu0 0.0
    %1231 = vmatpush1.msra.mxu0 0.0
    %1232 = vmatprep.subr.mxu0 0.0
    %1233 = vmatpush1.msra.mxu0 0.0
    %1234 = vmatprep.subr.mxu0 0.0
    %1235 = vmatpush1.msra.mxu0 0.0
    %1236 = vmatprep.subr.mxu0 0.0
    %1237 = vmatpush1.msra.mxu0 0.0
    %1238 = vmatprep.mubr.f32.mxu0 %v1102
    %1239 = vmatmul.mubr.f32.gmra.mrb[0].mxu0 %v1042
    %v1240 = vpop.f32.mrb[0].mxu0
    %v1241 = vadd.f32 %v1171, %v1240
    %v1242 = vpop.f32.mrb[0].mxu0
    %1243 = vdwg.mxu0
    %v1244 = vmax.f32 %v1241, 0.0
    %v1245 = vld [vmem:[%s5] sm:$0xff]
    %v1246 = vld [vmem:[%s5 + $0x8] sm:$0xff]
    %v1247 = vld [vmem:[%s5 + $0x10] sm:$0xf]
    %v1248 = vld [vmem:[%s6] sm:$0x1]
    %v1250 = vlaneseq
    %v1251 = vshrl.u32 %v1250, 7
    %v1252 = vsub.s32 0, %v1251
    %v1253 = vrot.slane %v1248, %v1252
    %vm1255 = vcmask 162816
    %v1257 = vsel %vm1255, %v1244, 0
    %vm1259 = vcmask 1043456
    %v1261 = vsel %vm1259, %v1247, 0
    %1263 = vmatprep.subr.mxu0 0.0
    %1264 = vmatpush1.msra.mxu0 %v1245
    %1265 = vmatprep.subr.mxu0 0.0
    %1266 = vmatpush1.msra.mxu0 %v1246
    %1267 = vmatprep.subr.mxu0 0.0
    %1268 = vmatpush1.msra.mxu0 %v1261
    %1269 = vmatprep.subr.mxu0 0.0
    %1270 = vmatpush1.msra.mxu0 0.0
    %1271 = vmatprep.subr.mxu0 0.0
    %1272 = vmatpush1.msra.mxu0 0.0
    %1273 = vmatprep.subr.mxu0 0.0
    %1274 = vmatpush1.msra.mxu0 0.0
    %1275 = vmatprep.subr.mxu0 0.0
    %1276 = vmatpush1.msra.mxu0 0.0
    %1277 = vmatprep.subr.mxu0 0.0
    %1278 = vmatpush1.msra.mxu0 0.0
    %1279 = vmatprep.subr.mxu0 0.0
    %1280 = vmatpush1.msra.mxu0 0.0
    %1281 = vmatprep.subr.mxu0 0.0
    %1282 = vmatpush1.msra.mxu0 0.0
    %1283 = vmatprep.subr.mxu0 0.0
    %1284 = vmatpush1.msra.mxu0 0.0
    %1285 = vmatprep.subr.mxu0 0.0
    %1286 = vmatpush1.msra.mxu0 0.0
    %1287 = vmatprep.subr.mxu0 0.0
    %1288 = vmatpush1.msra.mxu0 0.0
    %1289 = vmatprep.subr.mxu0 0.0
    %1290 = vmatpush1.msra.mxu0 0.0
    %1291 = vmatprep.subr.mxu0 0.0
    %1292 = vmatpush1.msra.mxu0 0.0
    %1293 = vmatprep.subr.mxu0 0.0
    %1294 = vmatpush1.msra.mxu0 0.0
    %1295 = vmatprep.subr.mxu0 0.0
    %1296 = vmatpush1.msra.mxu0 0.0
    %1297 = vmatprep.subr.mxu0 0.0
    %1298 = vmatpush1.msra.mxu0 0.0
    %1299 = vmatprep.subr.mxu0 0.0
    %1300 = vmatpush1.msra.mxu0 0.0
    %1301 = vmatprep.subr.mxu0 0.0
    %1302 = vmatpush1.msra.mxu0 0.0
    %1303 = vmatprep.subr.mxu0 0.0
    %1304 = vmatpush1.msra.mxu0 0.0
    %1305 = vmatprep.subr.mxu0 0.0
    %1306 = vmatpush1.msra.mxu0 0.0
    %1307 = vmatprep.subr.mxu0 0.0
    %1308 = vmatpush1.msra.mxu0 0.0
    %1309 = vmatprep.subr.mxu0 0.0
    %1310 = vmatpush1.msra.mxu0 0.0
    %1311 = vmatprep.subr.mxu0 0.0
    %1312 = vmatpush1.msra.mxu0 0.0
    %1313 = vmatprep.subr.mxu0 0.0
    %1314 = vmatpush1.msra.mxu0 0.0
    %1315 = vmatprep.subr.mxu0 0.0
    %1316 = vmatpush1.msra.mxu0 0.0
    %1317 = vmatprep.subr.mxu0 0.0
    %1318 = vmatpush1.msra.mxu0 0.0
    %1319 = vmatprep.subr.mxu0 0.0
    %1320 = vmatpush1.msra.mxu0 0.0
    %1321 = vmatprep.subr.mxu0 0.0
    %1322 = vmatpush1.msra.mxu0 0.0
    %1323 = vmatprep.subr.mxu0 0.0
    %1324 = vmatpush1.msra.mxu0 0.0
    %1325 = vmatprep.subr.mxu0 0.0
    %1326 = vmatpush1.msra.mxu0 0.0
    %1327 = vmatprep.mubr.f32.mxu0 0.0
    %1328 = vmatmul.mubr.f32.gmra.mrb[0].mxu0 %v1257
    %v1329 = vpop.f32.mrb[0].mxu0
    %v1330 = vadd.f32 %v1253, %v1329
    %v1331 = vpop.f32.mrb[0].mxu0
    %1332 = vdwg.mxu0
    %1333 = vst [vmem:[%s13] sm:$0xff] %v1330
    %v1334 = vld [vmem:[%s7] sm:$0xff]
    %v1335 = vld [vmem:[%s7 + $0x8] sm:$0xff]
    %v1336 = vld [vmem:[%s7 + $0x10] sm:$0xff]
    %v1337 = vld [vmem:[%s7 + $0x18] sm:$0xff]
    %v1338 = vld [vmem:[%s7 + $0x20] sm:$0xff]
    %v1339 = vld [vmem:[%s7 + $0x28] sm:$0xff]
    %v1340 = vld [vmem:[%s7 + $0x30] sm:$0xff]
    %v1341 = vld [vmem:[%s7 + $0x38] sm:$0xff]
    %v1342 = vld [vmem:[%s7 + $0x40] sm:$0xff]
    %v1343 = vld [vmem:[%s7 + $0x48] sm:$0xff]
    %v1344 = vld [vmem:[%s7 + $0x50] sm:$0xff]
    %v1345 = vld [vmem:[%s7 + $0x58] sm:$0xff]
    %v1346 = vld [vmem:[%s7 + $0x60] sm:$0xff]
    %v1347 = vld [vmem:[%s7 + $0x68] sm:$0xff]
    %v1348 = vld [vmem:[%s7 + $0x70] sm:$0xff]
    %v1349 = vld [vmem:[%s7 + $0x78] sm:$0xff]
    %v1350 = vld [vmem:[%s8] sm:$0x1]
    %v1352 = vlaneseq
    %v1353 = vshrl.u32 %v1352, 7
    %v1354 = vsub.s32 0, %v1353
    %v1355 = vrot.slane %v1350, %v1354
    %1357 = vmatprep.subr.mxu0 0.0
    %1358 = vmatpush1.msra.mxu0 %v1334
    %1359 = vmatprep.subr.mxu0 0.0
    %1360 = vmatpush1.msra.mxu0 %v1335
    %1361 = vmatprep.subr.mxu0 0.0
    %1362 = vmatpush1.msra.mxu0 %v1336
    %1363 = vmatprep.subr.mxu0 0.0
    %1364 = vmatpush1.msra.mxu0 %v1337
    %1365 = vmatprep.subr.mxu0 0.0
    %1366 = vmatpush1.msra.mxu0 %v1338
    %1367 = vmatprep.subr.mxu0 0.0
    %1368 = vmatpush1.msra.mxu0 %v1339
    %1369 = vmatprep.subr.mxu0 0.0
    %1370 = vmatpush1.msra.mxu0 %v1340
    %1371 = vmatprep.subr.mxu0 0.0
    %1372 = vmatpush1.msra.mxu0 %v1341
    %1373 = vmatprep.subr.mxu0 0.0
    %1374 = vmatpush1.msra.mxu0 %v1342
    %1375 = vmatprep.subr.mxu0 0.0
    %1376 = vmatpush1.msra.mxu0 %v1343
    %1377 = vmatprep.subr.mxu0 0.0
    %1378 = vmatpush1.msra.mxu0 %v1344
    %1379 = vmatprep.subr.mxu0 0.0
    %1380 = vmatpush1.msra.mxu0 %v1345
    %1381 = vmatprep.subr.mxu0 0.0
    %1382 = vmatpush1.msra.mxu0 %v1346
    %1383 = vmatprep.subr.mxu0 0.0
    %1384 = vmatpush1.msra.mxu0 %v1347
    %1385 = vmatprep.subr.mxu0 0.0
    %1386 = vmatpush1.msra.mxu0 %v1348
    %1387 = vmatprep.subr.mxu0 0.0
    %1388 = vmatpush1.msra.mxu0 %v1349
    %1389 = vmatprep.subr.mxu0 0.0
    %1390 = vmatpush1.msra.mxu0 0.0
    %1391 = vmatprep.subr.mxu0 0.0
    %1392 = vmatpush1.msra.mxu0 0.0
    %1393 = vmatprep.subr.mxu0 0.0
    %1394 = vmatpush1.msra.mxu0 0.0
    %1395 = vmatprep.subr.mxu0 0.0
    %1396 = vmatpush1.msra.mxu0 0.0
    %1397 = vmatprep.subr.mxu0 0.0
    %1398 = vmatpush1.msra.mxu0 0.0
    %1399 = vmatprep.subr.mxu0 0.0
    %1400 = vmatpush1.msra.mxu0 0.0
    %1401 = vmatprep.subr.mxu0 0.0
    %1402 = vmatpush1.msra.mxu0 0.0
    %1403 = vmatprep.subr.mxu0 0.0
    %1404 = vmatpush1.msra.mxu0 0.0
    %1405 = vmatprep.subr.mxu0 0.0
    %1406 = vmatpush1.msra.mxu0 0.0
    %1407 = vmatprep.subr.mxu0 0.0
    %1408 = vmatpush1.msra.mxu0 0.0
    %1409 = vmatprep.subr.mxu0 0.0
    %1410 = vmatpush1.msra.mxu0 0.0
    %1411 = vmatprep.subr.mxu0 0.0
    %1412 = vmatpush1.msra.mxu0 0.0
    %1413 = vmatprep.subr.mxu0 0.0
    %1414 = vmatpush1.msra.mxu0 0.0
    %1415 = vmatprep.subr.mxu0 0.0
    %1416 = vmatpush1.msra.mxu0 0.0
    %1417 = vmatprep.subr.mxu0 0.0
    %1418 = vmatpush1.msra.mxu0 0.0
    %1419 = vmatprep.subr.mxu0 0.0
    %1420 = vmatpush1.msra.mxu0 0.0
    %1421 = vmatprep.mubr.f32.mxu0 0.0
    %1422 = vmatmul.mubr.f32.gmra.mrb[0].mxu0 %v1330
    %v1423 = vpop.f32.mrb[0].mxu0
    %v1424 = vadd.f32 %v1355, %v1423
    %v1425 = vpop.f32.mrb[0].mxu0
    %1426 = vdwg.mxu0
    %v1427 = vmax.f32 %v1424, 0.0
    %v1428 = vld [vmem:[%s9] sm:$0xff]
    %v1429 = vld [vmem:[%s9 + $0x8] sm:$0xff]
    %v1430 = vld [vmem:[%s9 + $0x10] sm:$0xff]
    %v1431 = vld [vmem:[%s9 + $0x18] sm:$0xff]
    %v1432 = vld [vmem:[%s9 + $0x20] sm:$0xff]
    %v1433 = vld [vmem:[%s9 + $0x28] sm:$0xff]
    %v1434 = vld [vmem:[%s9 + $0x30] sm:$0xff]
    %v1435 = vld [vmem:[%s9 + $0x38] sm:$0xff]
    %v1436 = vld [vmem:[%s9 + $0x40] sm:$0xf]
    %v1437 = vld [vmem:[%s9 + $0x48] sm:$0xf]
    %v1438 = vld [vmem:[%s9 + $0x50] sm:$0xf]
    %v1439 = vld [vmem:[%s9 + $0x58] sm:$0xf]
    %v1440 = vld [vmem:[%s10] sm:$0xf]
    %v1442 = vlaneseq
    %v1443 = vshrl.u32 %v1442, 7
    %v1444 = vsub.s32 0, %v1443
    %v1445 = vrot.slane %v1440, %v1444
    %v1446 = vlaneseq
    %v1447 = vshrl.u32 %v1446, 7
    %v1448 = vsub.s32 1, %v1447
    %v1449 = vrot.slane %v1440, %v1448
    %v1450 = vlaneseq
    %v1451 = vshrl.u32 %v1450, 7
    %v1452 = vsub.s32 2, %v1451
    %v1453 = vrot.slane %v1440, %v1452
    %v1454 = vlaneseq
    %v1455 = vshrl.u32 %v1454, 7
    %v1456 = vsub.s32 3, %v1455
    %v1457 = vrot.slane %v1440, %v1456
    %v1463 = vsel %vm1255, %v1427, 0
    %v1466 = vsel %vm1259, %v1436, 0
    %v1469 = vsel %vm1259, %v1437, 0
    %v1472 = vsel %vm1259, %v1438, 0
    %v1475 = vsel %vm1259, %v1439, 0
    %1477 = vmatprep.subr.mxu0 %v1429
    %1478 = vmatpush1.msra.mxu0 %v1428
    %1479 = vmatprep.subr.mxu0 %v1433
    %1480 = vmatpush1.msra.mxu0 %v1432
    %1481 = vmatprep.subr.mxu0 %v1469
    %1482 = vmatpush1.msra.mxu0 %v1466
    %1483 = vmatprep.subr.mxu0 0.0
    %1484 = vmatpush1.msra.mxu0 0.0
    %1485 = vmatprep.subr.mxu0 0.0
    %1486 = vmatpush1.msra.mxu0 0.0
    %1487 = vmatprep.subr.mxu0 0.0
    %1488 = vmatpush1.msra.mxu0 0.0
    %1489 = vmatprep.subr.mxu0 0.0
    %1490 = vmatpush1.msra.mxu0 0.0
    %1491 = vmatprep.subr.mxu0 0.0
    %1492 = vmatpush1.msra.mxu0 0.0
    %1493 = vmatprep.subr.mxu0 0.0
    %1494 = vmatpush1.msra.mxu0 0.0
    %1495 = vmatprep.subr.mxu0 0.0
    %1496 = vmatpush1.msra.mxu0 0.0
    %1497 = vmatprep.subr.mxu0 0.0
    %1498 = vmatpush1.msra.mxu0 0.0
    %1499 = vmatprep.subr.mxu0 0.0
    %1500 = vmatpush1.msra.mxu0 0.0
    %1501 = vmatprep.subr.mxu0 0.0
    %1502 = vmatpush1.msra.mxu0 0.0
    %1503 = vmatprep.subr.mxu0 0.0
    %1504 = vmatpush1.msra.mxu0 0.0
    %1505 = vmatprep.subr.mxu0 0.0
    %1506 = vmatpush1.msra.mxu0 0.0
    %1507 = vmatprep.subr.mxu0 0.0
    %1508 = vmatpush1.msra.mxu0 0.0
    %1509 = vmatprep.subr.mxu0 0.0
    %1510 = vmatpush1.msra.mxu0 0.0
    %1511 = vmatprep.subr.mxu0 0.0
    %1512 = vmatpush1.msra.mxu0 0.0
    %1513 = vmatprep.subr.mxu0 0.0
    %1514 = vmatpush1.msra.mxu0 0.0
    %1515 = vmatprep.subr.mxu0 0.0
    %1516 = vmatpush1.msra.mxu0 0.0
    %1517 = vmatprep.subr.mxu0 0.0
    %1518 = vmatpush1.msra.mxu0 0.0
    %1519 = vmatprep.subr.mxu0 0.0
    %1520 = vmatpush1.msra.mxu0 0.0
    %1521 = vmatprep.subr.mxu0 0.0
    %1522 = vmatpush1.msra.mxu0 0.0
    %1523 = vmatprep.subr.mxu0 0.0
    %1524 = vmatpush1.msra.mxu0 0.0
    %1525 = vmatprep.subr.mxu0 0.0
    %1526 = vmatpush1.msra.mxu0 0.0
    %1527 = vmatprep.subr.mxu0 0.0
    %1528 = vmatpush1.msra.mxu0 0.0
    %1529 = vmatprep.subr.mxu0 0.0
    %1530 = vmatpush1.msra.mxu0 0.0
    %1531 = vmatprep.subr.mxu0 0.0
    %1532 = vmatpush1.msra.mxu0 0.0
    %1533 = vmatprep.subr.mxu0 0.0
    %1534 = vmatpush1.msra.mxu0 0.0
    %1535 = vmatprep.subr.mxu0 0.0
    %1536 = vmatpush1.msra.mxu0 0.0
    %1537 = vmatprep.subr.mxu0 0.0
    %1538 = vmatpush1.msra.mxu0 0.0
    %1539 = vmatprep.subr.mxu0 0.0
    %1540 = vmatpush1.msra.mxu0 0.0
    %1541 = vmatprep.mubr.f32.mxu0 0.0
    %1542 = vmatmul.mubr.f32.gmra.mrb[0].mxu0 %v1463
    %v1543 = vpop.f32.mrb[0].mxu0
    %v1544 = vadd.f32 %v1445, %v1543
    %v1545 = vpop.f32.mrb[0].mxu0
    %v1546 = vadd.f32 %v1449, %v1545
    %1547 = vdwg.mxu0
    %1548 = vmatprep.subr.mxu0 %v1431
    %1549 = vmatpush1.msra.mxu0 %v1430
    %1550 = vmatprep.subr.mxu0 %v1435
    %1551 = vmatpush1.msra.mxu0 %v1434
    %1552 = vmatprep.subr.mxu0 %v1475
    %1553 = vmatpush1.msra.mxu0 %v1472
    %1554 = vmatprep.subr.mxu0 0.0
    %1555 = vmatpush1.msra.mxu0 0.0
    %1556 = vmatprep.subr.mxu0 0.0
    %1557 = vmatpush1.msra.mxu0 0.0
    %1558 = vmatprep.subr.mxu0 0.0
    %1559 = vmatpush1.msra.mxu0 0.0
    %1560 = vmatprep.subr.mxu0 0.0
    %1561 = vmatpush1.msra.mxu0 0.0
    %1562 = vmatprep.subr.mxu0 0.0
    %1563 = vmatpush1.msra.mxu0 0.0
    %1564 = vmatprep.subr.mxu0 0.0
    %1565 = vmatpush1.msra.mxu0 0.0
    %1566 = vmatprep.subr.mxu0 0.0
    %1567 = vmatpush1.msra.mxu0 0.0
    %1568 = vmatprep.subr.mxu0 0.0
    %1569 = vmatpush1.msra.mxu0 0.0
    %1570 = vmatprep.subr.mxu0 0.0
    %1571 = vmatpush1.msra.mxu0 0.0
    %1572 = vmatprep.subr.mxu0 0.0
    %1573 = vmatpush1.msra.mxu0 0.0
    %1574 = vmatprep.subr.mxu0 0.0
    %1575 = vmatpush1.msra.mxu0 0.0
    %1576 = vmatprep.subr.mxu0 0.0
    %1577 = vmatpush1.msra.mxu0 0.0
    %1578 = vmatprep.subr.mxu0 0.0
    %1579 = vmatpush1.msra.mxu0 0.0
    %1580 = vmatprep.subr.mxu0 0.0
    %1581 = vmatpush1.msra.mxu0 0.0
    %1582 = vmatprep.subr.mxu0 0.0
    %1583 = vmatpush1.msra.mxu0 0.0
    %1584 = vmatprep.subr.mxu0 0.0
    %1585 = vmatpush1.msra.mxu0 0.0
    %1586 = vmatprep.subr.mxu0 0.0
    %1587 = vmatpush1.msra.mxu0 0.0
    %1588 = vmatprep.subr.mxu0 0.0
    %1589 = vmatpush1.msra.mxu0 0.0
    %1590 = vmatprep.subr.mxu0 0.0
    %1591 = vmatpush1.msra.mxu0 0.0
    %1592 = vmatprep.subr.mxu0 0.0
    %1593 = vmatpush1.msra.mxu0 0.0
    %1594 = vmatprep.subr.mxu0 0.0
    %1595 = vmatpush1.msra.mxu0 0.0
    %1596 = vmatprep.subr.mxu0 0.0
    %1597 = vmatpush1.msra.mxu0 0.0
    %1598 = vmatprep.subr.mxu0 0.0
    %1599 = vmatpush1.msra.mxu0 0.0
    %1600 = vmatprep.subr.mxu0 0.0
    %1601 = vmatpush1.msra.mxu0 0.0
    %1602 = vmatprep.subr.mxu0 0.0
    %1603 = vmatpush1.msra.mxu0 0.0
    %1604 = vmatprep.subr.mxu0 0.0
    %1605 = vmatpush1.msra.mxu0 0.0
    %1606 = vmatprep.subr.mxu0 0.0
    %1607 = vmatpush1.msra.mxu0 0.0
    %1608 = vmatprep.subr.mxu0 0.0
    %1609 = vmatpush1.msra.mxu0 0.0
    %1610 = vmatprep.subr.mxu0 0.0
    %1611 = vmatpush1.msra.mxu0 0.0
    %1612 = vmatprep.mubr.f32.mxu0 0.0
    %1613 = vmatmul.mubr.f32.gmra.mrb[0].mxu0 %v1463
    %v1614 = vpop.f32.mrb[0].mxu0
    %v1615 = vadd.f32 %v1453, %v1614
    %v1616 = vpop.f32.mrb[0].mxu0
    %v1617 = vadd.f32 %v1457, %v1616
    %1618 = vdwg.mxu0
    %v1619 = vmax.f32 %v1544, 0.0
    %v1620 = vmax.f32 %v1546, 0.0
    %v1621 = vmax.f32 %v1615, 0.0
    %v1622 = vmax.f32 %v1617, 0.0
    %v1623 = vld [vmem:[%s11] sm:$0xff]
    %v1624 = vld [vmem:[%s11 + $0x8] sm:$0xff]
    %v1625 = vld [vmem:[%s11 + $0x10] sm:$0xff]
    %v1626 = vld [vmem:[%s11 + $0x18] sm:$0xff]
    %v1627 = vld [vmem:[%s11 + $0x20] sm:$0xff]
    %v1628 = vld [vmem:[%s11 + $0x28] sm:$0xff]
    %v1629 = vld [vmem:[%s11 + $0x30] sm:$0xff]
    %v1630 = vld [vmem:[%s11 + $0x38] sm:$0xff]
    %v1631 = vld [vmem:[%s11 + $0x40] sm:$0xff]
    %v1632 = vld [vmem:[%s11 + $0x48] sm:$0xff]
    %v1633 = vld [vmem:[%s11 + $0x50] sm:$0xff]
    %v1634 = vld [vmem:[%s11 + $0x58] sm:$0xff]
    %v1635 = vld [vmem:[%s11 + $0x60] sm:$0xff]
    %v1636 = vld [vmem:[%s11 + $0x68] sm:$0xff]
    %v1637 = vld [vmem:[%s11 + $0x70] sm:$0xff]
    %v1638 = vld [vmem:[%s11 + $0x78] sm:$0xff]
    %v1639 = vld [vmem:[%s11 + $0x80] sm:$0xff]
    %v1640 = vld [vmem:[%s11 + $0x88] sm:$0xff]
    %v1641 = vld [vmem:[%s11 + $0x90] sm:$0xff]
    %v1642 = vld [vmem:[%s11 + $0x98] sm:$0xff]
    %v1643 = vld [vmem:[%s11 + $0xa0] sm:$0xff]
    %v1644 = vld [vmem:[%s11 + $0xa8] sm:$0xff]
    %v1645 = vld [vmem:[%s11 + $0xb0] sm:$0xff]
    %v1646 = vld [vmem:[%s11 + $0xb8] sm:$0xff]
    %v1647 = vld [vmem:[%s11 + $0xc0] sm:$0xff]
    %v1648 = vld [vmem:[%s11 + $0xc8] sm:$0xff]
    %v1649 = vld [vmem:[%s11 + $0xd0] sm:$0xff]
    %v1650 = vld [vmem:[%s11 + $0xd8] sm:$0xff]
    %v1651 = vld [vmem:[%s11 + $0xe0] sm:$0xff]
    %v1652 = vld [vmem:[%s11 + $0xe8] sm:$0xff]
    %v1653 = vld [vmem:[%s11 + $0xf0] sm:$0xff]
    %v1654 = vld [vmem:[%s11 + $0xf8] sm:$0xff]
    %v1655 = vld [vmem:[%s11 + $0x100] sm:$0xff]
    %v1656 = vld [vmem:[%s11 + $0x108] sm:$0xff]
    %v1657 = vld [vmem:[%s11 + $0x110] sm:$0xff]
    %v1658 = vld [vmem:[%s11 + $0x118] sm:$0xff]
    %v1659 = vld [vmem:[%s11 + $0x120] sm:$0xff]
    %v1660 = vld [vmem:[%s11 + $0x128] sm:$0xff]
    %v1661 = vld [vmem:[%s11 + $0x130] sm:$0xff]
    %v1662 = vld [vmem:[%s11 + $0x138] sm:$0xff]
    %v1663 = vld [vmem:[%s11 + $0x140] sm:$0xff]
    %v1664 = vld [vmem:[%s11 + $0x148] sm:$0xff]
    %v1665 = vld [vmem:[%s11 + $0x150] sm:$0xff]
    %v1666 = vld [vmem:[%s11 + $0x158] sm:$0xff]
    %v1667 = vld [vmem:[%s11 + $0x160] sm:$0xff]
    %v1668 = vld [vmem:[%s11 + $0x168] sm:$0xff]
    %v1669 = vld [vmem:[%s11 + $0x170] sm:$0xff]
    %v1670 = vld [vmem:[%s11 + $0x178] sm:$0xff]
    %v1671 = vld [vmem:[%s11 + $0x180] sm:$0xff]
    %v1672 = vld [vmem:[%s11 + $0x188] sm:$0xff]
    %v1673 = vld [vmem:[%s11 + $0x190] sm:$0xff]
    %v1674 = vld [vmem:[%s11 + $0x198] sm:$0xff]
    %v1675 = vld [vmem:[%s11 + $0x1a0] sm:$0xff]
    %v1676 = vld [vmem:[%s11 + $0x1a8] sm:$0xff]
    %v1677 = vld [vmem:[%s11 + $0x1b0] sm:$0xff]
    %v1678 = vld [vmem:[%s11 + $0x1b8] sm:$0xff]
    %v1679 = vld [vmem:[%s11 + $0x1c0] sm:$0xff]
    %v1680 = vld [vmem:[%s11 + $0x1c8] sm:$0xff]
    %v1681 = vld [vmem:[%s11 + $0x1d0] sm:$0xff]
    %v1682 = vld [vmem:[%s11 + $0x1d8] sm:$0xff]
    %v1683 = vld [vmem:[%s11 + $0x1e0] sm:$0xff]
    %v1684 = vld [vmem:[%s11 + $0x1e8] sm:$0xff]
    %v1685 = vld [vmem:[%s11 + $0x1f0] sm:$0xff]
    %v1686 = vld [vmem:[%s11 + $0x1f8] sm:$0xff]
    %v1687 = vld [vmem:[%s11 + $0x200] sm:$0xff]
    %v1688 = vld [vmem:[%s11 + $0x208] sm:$0xff]
    %v1689 = vld [vmem:[%s11 + $0x210] sm:$0xff]
    %v1690 = vld [vmem:[%s11 + $0x218] sm:$0xff]
    %v1691 = vld [vmem:[%s11 + $0x220] sm:$0xff]
    %v1692 = vld [vmem:[%s11 + $0x228] sm:$0xff]
    %v1693 = vld [vmem:[%s11 + $0x230] sm:$0xff]
    %v1694 = vld [vmem:[%s11 + $0x238] sm:$0xff]
    %v1695 = vld [vmem:[%s11 + $0x240] sm:$0xff]
    %v1696 = vld [vmem:[%s11 + $0x248] sm:$0xff]
    %v1697 = vld [vmem:[%s11 + $0x250] sm:$0xff]
    %v1698 = vld [vmem:[%s11 + $0x258] sm:$0xff]
    %v1699 = vld [vmem:[%s11 + $0x260] sm:$0xff]
    %v1700 = vld [vmem:[%s11 + $0x268] sm:$0xff]
    %v1701 = vld [vmem:[%s11 + $0x270] sm:$0xff]
    %v1702 = vld [vmem:[%s11 + $0x278] sm:$0xff]
    %v1703 = vld [vmem:[%s11 + $0x280] sm:$0xff]
    %v1704 = vld [vmem:[%s11 + $0x288] sm:$0xff]
    %v1705 = vld [vmem:[%s11 + $0x290] sm:$0xff]
    %v1706 = vld [vmem:[%s11 + $0x298] sm:$0xff]
    %v1707 = vld [vmem:[%s11 + $0x2a0] sm:$0xff]
    %v1708 = vld [vmem:[%s11 + $0x2a8] sm:$0xff]
    %v1709 = vld [vmem:[%s11 + $0x2b0] sm:$0xff]
    %v1710 = vld [vmem:[%s11 + $0x2b8] sm:$0xff]
    %v1711 = vld [vmem:[%s11 + $0x2c0] sm:$0xff]
    %v1712 = vld [vmem:[%s11 + $0x2c8] sm:$0xff]
    %v1713 = vld [vmem:[%s11 + $0x2d0] sm:$0xff]
    %v1714 = vld [vmem:[%s11 + $0x2d8] sm:$0xff]
    %v1715 = vld [vmem:[%s11 + $0x2e0] sm:$0xff]
    %v1716 = vld [vmem:[%s11 + $0x2e8] sm:$0xff]
    %v1717 = vld [vmem:[%s11 + $0x2f0] sm:$0xff]
    %v1718 = vld [vmem:[%s11 + $0x2f8] sm:$0xff]
    %v1719 = vld [vmem:[%s11 + $0x300] sm:$0xff]
    %v1720 = vld [vmem:[%s11 + $0x308] sm:$0xff]
    %v1721 = vld [vmem:[%s11 + $0x310] sm:$0xff]
    %v1722 = vld [vmem:[%s11 + $0x318] sm:$0xff]
    %v1723 = vld [vmem:[%s11 + $0x320] sm:$0xff]
    %v1724 = vld [vmem:[%s11 + $0x328] sm:$0xff]
    %v1725 = vld [vmem:[%s11 + $0x330] sm:$0xff]
    %v1726 = vld [vmem:[%s11 + $0x338] sm:$0xff]
    %v1727 = vld [vmem:[%s11 + $0x340] sm:$0xff]
    %v1728 = vld [vmem:[%s11 + $0x348] sm:$0xff]
    %v1729 = vld [vmem:[%s11 + $0x350] sm:$0xff]
    %v1730 = vld [vmem:[%s11 + $0x358] sm:$0xff]
    %v1731 = vld [vmem:[%s11 + $0x360] sm:$0xff]
    %v1732 = vld [vmem:[%s11 + $0x368] sm:$0xff]
    %v1733 = vld [vmem:[%s11 + $0x370] sm:$0xff]
    %v1734 = vld [vmem:[%s11 + $0x378] sm:$0xff]
    %v1735 = vld [vmem:[%s11 + $0x380] sm:$0xff]
    %v1736 = vld [vmem:[%s11 + $0x388] sm:$0xff]
    %v1737 = vld [vmem:[%s11 + $0x390] sm:$0xff]
    %v1738 = vld [vmem:[%s11 + $0x398] sm:$0xff]
    %v1739 = vld [vmem:[%s11 + $0x3a0] sm:$0xff]
    %v1740 = vld [vmem:[%s11 + $0x3a8] sm:$0xff]
    %v1741 = vld [vmem:[%s11 + $0x3b0] sm:$0xff]
    %v1742 = vld [vmem:[%s11 + $0x3b8] sm:$0xff]
    %v1743 = vld [vmem:[%s11 + $0x3c0] sm:$0xff]
    %v1744 = vld [vmem:[%s11 + $0x3c8] sm:$0xff]
    %v1745 = vld [vmem:[%s11 + $0x3d0] sm:$0xff]
    %v1746 = vld [vmem:[%s11 + $0x3d8] sm:$0xff]
    %v1747 = vld [vmem:[%s11 + $0x3e0] sm:$0xff]
    %v1748 = vld [vmem:[%s11 + $0x3e8] sm:$0xff]
    %v1749 = vld [vmem:[%s11 + $0x3f0] sm:$0xff]
    %v1750 = vld [vmem:[%s11 + $0x3f8] sm:$0xff]
    %v1751 = vld [vmem:[%s11 + $0x400] sm:$0xff]
    %v1752 = vld [vmem:[%s11 + $0x408] sm:$0xff]
    %v1753 = vld [vmem:[%s11 + $0x410] sm:$0xff]
    %v1754 = vld [vmem:[%s11 + $0x418] sm:$0xff]
    %v1755 = vld [vmem:[%s11 + $0x420] sm:$0xff]
    %v1756 = vld [vmem:[%s11 + $0x428] sm:$0xff]
    %v1757 = vld [vmem:[%s11 + $0x430] sm:$0xff]
    %v1758 = vld [vmem:[%s11 + $0x438] sm:$0xff]
    %v1759 = vld [vmem:[%s11 + $0x440] sm:$0xff]
    %v1760 = vld [vmem:[%s11 + $0x448] sm:$0xff]
    %v1761 = vld [vmem:[%s11 + $0x450] sm:$0xff]
    %v1762 = vld [vmem:[%s11 + $0x458] sm:$0xff]
    %v1763 = vld [vmem:[%s11 + $0x460] sm:$0xff]
    %v1764 = vld [vmem:[%s11 + $0x468] sm:$0xff]
    %v1765 = vld [vmem:[%s11 + $0x470] sm:$0xff]
    %v1766 = vld [vmem:[%s11 + $0x478] sm:$0xff]
    %v1767 = vld [vmem:[%s11 + $0x480] sm:$0xff]
    %v1768 = vld [vmem:[%s11 + $0x488] sm:$0xff]
    %v1769 = vld [vmem:[%s11 + $0x490] sm:$0xff]
    %v1770 = vld [vmem:[%s11 + $0x498] sm:$0xff]
    %v1771 = vld [vmem:[%s11 + $0x4a0] sm:$0xff]
    %v1772 = vld [vmem:[%s11 + $0x4a8] sm:$0xff]
    %v1773 = vld [vmem:[%s11 + $0x4b0] sm:$0xff]
    %v1774 = vld [vmem:[%s11 + $0x4b8] sm:$0xff]
    %v1775 = vld [vmem:[%s11 + $0x4c0] sm:$0xff]
    %v1776 = vld [vmem:[%s11 + $0x4c8] sm:$0xff]
    %v1777 = vld [vmem:[%s11 + $0x4d0] sm:$0xff]
    %v1778 = vld [vmem:[%s11 + $0x4d8] sm:$0xff]
    %v1779 = vld [vmem:[%s11 + $0x4e0] sm:$0xff]
    %v1780 = vld [vmem:[%s11 + $0x4e8] sm:$0xff]
    %v1781 = vld [vmem:[%s11 + $0x4f0] sm:$0xff]
    %v1782 = vld [vmem:[%s11 + $0x4f8] sm:$0xff]
    %v1783 = vld [vmem:[%s11 + $0x500] sm:$0xff]
    %v1784 = vld [vmem:[%s11 + $0x508] sm:$0xff]
    %v1785 = vld [vmem:[%s11 + $0x510] sm:$0xff]
    %v1786 = vld [vmem:[%s11 + $0x518] sm:$0xff]
    %v1787 = vld [vmem:[%s11 + $0x520] sm:$0xff]
    %v1788 = vld [vmem:[%s11 + $0x528] sm:$0xff]
    %v1789 = vld [vmem:[%s11 + $0x530] sm:$0xff]
    %v1790 = vld [vmem:[%s11 + $0x538] sm:$0xff]
    %v1791 = vld [vmem:[%s11 + $0x540] sm:$0xff]
    %v1792 = vld [vmem:[%s11 + $0x548] sm:$0xff]
    %v1793 = vld [vmem:[%s11 + $0x550] sm:$0xff]
    %v1794 = vld [vmem:[%s11 + $0x558] sm:$0xff]
    %v1795 = vld [vmem:[%s11 + $0x560] sm:$0xff]
    %v1796 = vld [vmem:[%s11 + $0x568] sm:$0xff]
    %v1797 = vld [vmem:[%s11 + $0x570] sm:$0xff]
    %v1798 = vld [vmem:[%s11 + $0x578] sm:$0xff]
    %v1799 = vld [vmem:[%s11 + $0x580] sm:$0xff]
    %v1800 = vld [vmem:[%s11 + $0x588] sm:$0xff]
    %v1801 = vld [vmem:[%s11 + $0x590] sm:$0xff]
    %v1802 = vld [vmem:[%s11 + $0x598] sm:$0xff]
    %v1803 = vld [vmem:[%s11 + $0x5a0] sm:$0xff]
    %v1804 = vld [vmem:[%s11 + $0x5a8] sm:$0xff]
    %v1805 = vld [vmem:[%s11 + $0x5b0] sm:$0xff]
    %v1806 = vld [vmem:[%s11 + $0x5b8] sm:$0xff]
    %v1807 = vld [vmem:[%s11 + $0x5c0] sm:$0xff]
    %v1808 = vld [vmem:[%s11 + $0x5c8] sm:$0xff]
    %v1809 = vld [vmem:[%s11 + $0x5d0] sm:$0xff]
    %v1810 = vld [vmem:[%s11 + $0x5d8] sm:$0xff]
    %v1811 = vld [vmem:[%s11 + $0x5e0] sm:$0xff]
    %v1812 = vld [vmem:[%s11 + $0x5e8] sm:$0xff]
    %v1813 = vld [vmem:[%s11 + $0x5f0] sm:$0xff]
    %v1814 = vld [vmem:[%s11 + $0x5f8] sm:$0xff]
    %v1815 = vld [vmem:[%s11 + $0x600] sm:$0xff]
    %v1816 = vld [vmem:[%s11 + $0x608] sm:$0xff]
    %v1817 = vld [vmem:[%s11 + $0x610] sm:$0xff]
    %v1818 = vld [vmem:[%s11 + $0x618] sm:$0xff]
    %v1819 = vld [vmem:[%s11 + $0x620] sm:$0xff]
    %v1820 = vld [vmem:[%s11 + $0x628] sm:$0xff]
    %v1821 = vld [vmem:[%s11 + $0x630] sm:$0xff]
    %v1822 = vld [vmem:[%s11 + $0x638] sm:$0xff]
    %v1823 = vld [vmem:[%s11 + $0x640] sm:$0xff]
    %v1824 = vld [vmem:[%s11 + $0x648] sm:$0xff]
    %v1825 = vld [vmem:[%s11 + $0x650] sm:$0xff]
    %v1826 = vld [vmem:[%s11 + $0x658] sm:$0xff]
    %v1827 = vld [vmem:[%s11 + $0x660] sm:$0xff]
    %v1828 = vld [vmem:[%s11 + $0x668] sm:$0xff]
    %v1829 = vld [vmem:[%s11 + $0x670] sm:$0xff]
    %v1830 = vld [vmem:[%s11 + $0x678] sm:$0xff]
    %v1831 = vld [vmem:[%s11 + $0x680] sm:$0xff]
    %v1832 = vld [vmem:[%s11 + $0x688] sm:$0xff]
    %v1833 = vld [vmem:[%s11 + $0x690] sm:$0xff]
    %v1834 = vld [vmem:[%s11 + $0x698] sm:$0xff]
    %v1835 = vld [vmem:[%s11 + $0x6a0] sm:$0xff]
    %v1836 = vld [vmem:[%s11 + $0x6a8] sm:$0xff]
    %v1837 = vld [vmem:[%s11 + $0x6b0] sm:$0xff]
    %v1838 = vld [vmem:[%s11 + $0x6b8] sm:$0xff]
    %v1839 = vld [vmem:[%s11 + $0x6c0] sm:$0xff]
    %v1840 = vld [vmem:[%s11 + $0x6c8] sm:$0xff]
    %v1841 = vld [vmem:[%s11 + $0x6d0] sm:$0xff]
    %v1842 = vld [vmem:[%s11 + $0x6d8] sm:$0xff]
    %v1843 = vld [vmem:[%s11 + $0x6e0] sm:$0xff]
    %v1844 = vld [vmem:[%s11 + $0x6e8] sm:$0xff]
    %v1845 = vld [vmem:[%s11 + $0x6f0] sm:$0xff]
    %v1846 = vld [vmem:[%s11 + $0x6f8] sm:$0xff]
    %v1847 = vld [vmem:[%s11 + $0x700] sm:$0xff]
    %v1848 = vld [vmem:[%s11 + $0x708] sm:$0xff]
    %v1849 = vld [vmem:[%s11 + $0x710] sm:$0xff]
    %v1850 = vld [vmem:[%s11 + $0x718] sm:$0xff]
    %v1851 = vld [vmem:[%s11 + $0x720] sm:$0xff]
    %v1852 = vld [vmem:[%s11 + $0x728] sm:$0xff]
    %v1853 = vld [vmem:[%s11 + $0x730] sm:$0xff]
    %v1854 = vld [vmem:[%s11 + $0x738] sm:$0xff]
    %v1855 = vld [vmem:[%s11 + $0x740] sm:$0xff]
    %v1856 = vld [vmem:[%s11 + $0x748] sm:$0xff]
    %v1857 = vld [vmem:[%s11 + $0x750] sm:$0xff]
    %v1858 = vld [vmem:[%s11 + $0x758] sm:$0xff]
    %v1859 = vld [vmem:[%s11 + $0x760] sm:$0xff]
    %v1860 = vld [vmem:[%s11 + $0x768] sm:$0xff]
    %v1861 = vld [vmem:[%s11 + $0x770] sm:$0xff]
    %v1862 = vld [vmem:[%s11 + $0x778] sm:$0xff]
    %v1863 = vld [vmem:[%s11 + $0x780] sm:$0xff]
    %v1864 = vld [vmem:[%s11 + $0x788] sm:$0xff]
    %v1865 = vld [vmem:[%s11 + $0x790] sm:$0xff]
    %v1866 = vld [vmem:[%s11 + $0x798] sm:$0xff]
    %v1867 = vld [vmem:[%s11 + $0x7a0] sm:$0xff]
    %v1868 = vld [vmem:[%s11 + $0x7a8] sm:$0xff]
    %v1869 = vld [vmem:[%s11 + $0x7b0] sm:$0xff]
    %v1870 = vld [vmem:[%s11 + $0x7b8] sm:$0xff]
    %v1871 = vld [vmem:[%s11 + $0x7c0] sm:$0xff]
    %v1872 = vld [vmem:[%s11 + $0x7c8] sm:$0xff]
    %v1873 = vld [vmem:[%s11 + $0x7d0] sm:$0xff]
    %v1874 = vld [vmem:[%s11 + $0x7d8] sm:$0xff]
    %v1875 = vld [vmem:[%s11 + $0x7e0] sm:$0xff]
    %v1876 = vld [vmem:[%s11 + $0x7e8] sm:$0xff]
    %v1877 = vld [vmem:[%s11 + $0x7f0] sm:$0xff]
    %v1878 = vld [vmem:[%s11 + $0x7f8] sm:$0xff]
    %v1879 = vld [vmem:[%s11 + $0x800] sm:$0xff]
    %v1880 = vld [vmem:[%s11 + $0x808] sm:$0xff]
    %v1881 = vld [vmem:[%s11 + $0x810] sm:$0xff]
    %v1882 = vld [vmem:[%s11 + $0x818] sm:$0xff]
    %v1883 = vld [vmem:[%s11 + $0x820] sm:$0xff]
    %v1884 = vld [vmem:[%s11 + $0x828] sm:$0xff]
    %v1885 = vld [vmem:[%s11 + $0x830] sm:$0xff]
    %v1886 = vld [vmem:[%s11 + $0x838] sm:$0xff]
    %v1887 = vld [vmem:[%s11 + $0x840] sm:$0xff]
    %v1888 = vld [vmem:[%s11 + $0x848] sm:$0xff]
    %v1889 = vld [vmem:[%s11 + $0x850] sm:$0xff]
    %v1890 = vld [vmem:[%s11 + $0x858] sm:$0xff]
    %v1891 = vld [vmem:[%s11 + $0x860] sm:$0xff]
    %v1892 = vld [vmem:[%s11 + $0x868] sm:$0xff]
    %v1893 = vld [vmem:[%s11 + $0x870] sm:$0xff]
    %v1894 = vld [vmem:[%s11 + $0x878] sm:$0xff]
    %v1895 = vld [vmem:[%s11 + $0x880] sm:$0xff]
    %v1896 = vld [vmem:[%s11 + $0x888] sm:$0xff]
    %v1897 = vld [vmem:[%s11 + $0x890] sm:$0xff]
    %v1898 = vld [vmem:[%s11 + $0x898] sm:$0xff]
    %v1899 = vld [vmem:[%s11 + $0x8a0] sm:$0xff]
    %v1900 = vld [vmem:[%s11 + $0x8a8] sm:$0xff]
    %v1901 = vld [vmem:[%s11 + $0x8b0] sm:$0xff]
    %v1902 = vld [vmem:[%s11 + $0x8b8] sm:$0xff]
    %v1903 = vld [vmem:[%s11 + $0x8c0] sm:$0xff]
    %v1904 = vld [vmem:[%s11 + $0x8c8] sm:$0xff]
    %v1905 = vld [vmem:[%s11 + $0x8d0] sm:$0xff]
    %v1906 = vld [vmem:[%s11 + $0x8d8] sm:$0xff]
    %v1907 = vld [vmem:[%s11 + $0x8e0] sm:$0xff]
    %v1908 = vld [vmem:[%s11 + $0x8e8] sm:$0xff]
    %v1909 = vld [vmem:[%s11 + $0x8f0] sm:$0xff]
    %v1910 = vld [vmem:[%s11 + $0x8f8] sm:$0xff]
    %v1911 = vld [vmem:[%s11 + $0x900] sm:$0xff]
    %v1912 = vld [vmem:[%s11 + $0x908] sm:$0xff]
    %v1913 = vld [vmem:[%s11 + $0x910] sm:$0xff]
    %v1914 = vld [vmem:[%s11 + $0x918] sm:$0xff]
    %v1915 = vld [vmem:[%s11 + $0x920] sm:$0xff]
    %v1916 = vld [vmem:[%s11 + $0x928] sm:$0xff]
    %v1917 = vld [vmem:[%s11 + $0x930] sm:$0xff]
    %v1918 = vld [vmem:[%s11 + $0x938] sm:$0xff]
    %v1919 = vld [vmem:[%s11 + $0x940] sm:$0xff]
    %v1920 = vld [vmem:[%s11 + $0x948] sm:$0xff]
    %v1921 = vld [vmem:[%s11 + $0x950] sm:$0xff]
    %v1922 = vld [vmem:[%s11 + $0x958] sm:$0xff]
    %v1923 = vld [vmem:[%s11 + $0x960] sm:$0xff]
    %v1924 = vld [vmem:[%s11 + $0x968] sm:$0xff]
    %v1925 = vld [vmem:[%s11 + $0x970] sm:$0xff]
    %v1926 = vld [vmem:[%s11 + $0x978] sm:$0xff]
    %v1927 = vld [vmem:[%s11 + $0x980] sm:$0xff]
    %v1928 = vld [vmem:[%s11 + $0x988] sm:$0xff]
    %v1929 = vld [vmem:[%s11 + $0x990] sm:$0xff]
    %v1930 = vld [vmem:[%s11 + $0x998] sm:$0xff]
    %v1931 = vld [vmem:[%s11 + $0x9a0] sm:$0xff]
    %v1932 = vld [vmem:[%s11 + $0x9a8] sm:$0xff]
    %v1933 = vld [vmem:[%s11 + $0x9b0] sm:$0xff]
    %v1934 = vld [vmem:[%s11 + $0x9b8] sm:$0xff]
    %v1935 = vld [vmem:[%s11 + $0x9c0] sm:$0xff]
    %v1936 = vld [vmem:[%s11 + $0x9c8] sm:$0xff]
    %v1937 = vld [vmem:[%s11 + $0x9d0] sm:$0xff]
    %v1938 = vld [vmem:[%s11 + $0x9d8] sm:$0xff]
    %v1939 = vld [vmem:[%s11 + $0x9e0] sm:$0xff]
    %v1940 = vld [vmem:[%s11 + $0x9e8] sm:$0xff]
    %v1941 = vld [vmem:[%s11 + $0x9f0] sm:$0xff]
    %v1942 = vld [vmem:[%s11 + $0x9f8] sm:$0xff]
    %v1943 = vld [vmem:[%s11 + $0xa00] sm:$0xff]
    %v1944 = vld [vmem:[%s11 + $0xa08] sm:$0xff]
    %v1945 = vld [vmem:[%s11 + $0xa10] sm:$0xff]
    %v1946 = vld [vmem:[%s11 + $0xa18] sm:$0xff]
    %v1947 = vld [vmem:[%s11 + $0xa20] sm:$0xff]
    %v1948 = vld [vmem:[%s11 + $0xa28] sm:$0xff]
    %v1949 = vld [vmem:[%s11 + $0xa30] sm:$0xff]
    %v1950 = vld [vmem:[%s11 + $0xa38] sm:$0xff]
    %v1951 = vld [vmem:[%s11 + $0xa40] sm:$0xff]
    %v1952 = vld [vmem:[%s11 + $0xa48] sm:$0xff]
    %v1953 = vld [vmem:[%s11 + $0xa50] sm:$0xff]
    %v1954 = vld [vmem:[%s11 + $0xa58] sm:$0xff]
    %v1955 = vld [vmem:[%s11 + $0xa60] sm:$0xff]
    %v1956 = vld [vmem:[%s11 + $0xa68] sm:$0xff]
    %v1957 = vld [vmem:[%s11 + $0xa70] sm:$0xff]
    %v1958 = vld [vmem:[%s11 + $0xa78] sm:$0xff]
    %v1959 = vld [vmem:[%s11 + $0xa80] sm:$0xff]
    %v1960 = vld [vmem:[%s11 + $0xa88] sm:$0xff]
    %v1961 = vld [vmem:[%s11 + $0xa90] sm:$0xff]
    %v1962 = vld [vmem:[%s11 + $0xa98] sm:$0xff]
    %v1963 = vld [vmem:[%s11 + $0xaa0] sm:$0xff]
    %v1964 = vld [vmem:[%s11 + $0xaa8] sm:$0xff]
    %v1965 = vld [vmem:[%s11 + $0xab0] sm:$0xff]
    %v1966 = vld [vmem:[%s11 + $0xab8] sm:$0xff]
    %v1967 = vld [vmem:[%s11 + $0xac0] sm:$0xff]
    %v1968 = vld [vmem:[%s11 + $0xac8] sm:$0xff]
    %v1969 = vld [vmem:[%s11 + $0xad0] sm:$0xff]
    %v1970 = vld [vmem:[%s11 + $0xad8] sm:$0xff]
    %v1971 = vld [vmem:[%s11 + $0xae0] sm:$0xff]
    %v1972 = vld [vmem:[%s11 + $0xae8] sm:$0xff]
    %v1973 = vld [vmem:[%s12] sm:$0x7f]
    %v1975 = vlaneseq
    %v1976 = vshrl.u32 %v1975, 7
    %v1977 = vsub.s32 0, %v1976
    %v1978 = vrot.slane %v1973, %v1977
    %v1979 = vlaneseq
    %v1980 = vshrl.u32 %v1979, 7
    %v1981 = vsub.s32 1, %v1980
    %v1982 = vrot.slane %v1973, %v1981
    %v1983 = vlaneseq
    %v1984 = vshrl.u32 %v1983, 7
    %v1985 = vsub.s32 2, %v1984
    %v1986 = vrot.slane %v1973, %v1985
    %v1987 = vlaneseq
    %v1988 = vshrl.u32 %v1987, 7
    %v1989 = vsub.s32 3, %v1988
    %v1990 = vrot.slane %v1973, %v1989
    %v1991 = vlaneseq
    %v1992 = vshrl.u32 %v1991, 7
    %v1993 = vsub.s32 4, %v1992
    %v1994 = vrot.slane %v1973, %v1993
    %v1995 = vlaneseq
    %v1996 = vshrl.u32 %v1995, 7
    %v1997 = vsub.s32 5, %v1996
    %v1998 = vrot.slane %v1973, %v1997
    %v1999 = vlaneseq
    %v2000 = vshrl.u32 %v1999, 7
    %v2001 = vsub.s32 6, %v2000
    %v2002 = vrot.slane %v1973, %v2001
    %v2011 = vsel %vm468, %v1622, 0
    %2013 = vmatprep.subr.mxu0 %v1624
    %2014 = vmatpush1.msra.mxu0 %v1623
    %2015 = vmatprep.subr.mxu0 %v1631
    %2016 = vmatpush1.msra.mxu0 %v1630
    %2017 = vmatprep.subr.mxu0 %v1638
    %2018 = vmatpush1.msra.mxu0 %v1637
    %2019 = vmatprep.subr.mxu0 %v1645
    %2020 = vmatpush1.msra.mxu0 %v1644
    %2021 = vmatprep.subr.mxu0 %v1652
    %2022 = vmatpush1.msra.mxu0 %v1651
    %2023 = vmatprep.subr.mxu0 %v1659
    %2024 = vmatpush1.msra.mxu0 %v1658
    %2025 = vmatprep.subr.mxu0 %v1666
    %2026 = vmatpush1.msra.mxu0 %v1665
    %2027 = vmatprep.subr.mxu0 %v1673
    %2028 = vmatpush1.msra.mxu0 %v1672
    %2029 = vmatprep.subr.mxu0 %v1680
    %2030 = vmatpush1.msra.mxu0 %v1679
    %2031 = vmatprep.subr.mxu0 %v1687
    %2032 = vmatpush1.msra.mxu0 %v1686
    %2033 = vmatprep.subr.mxu0 %v1694
    %2034 = vmatpush1.msra.mxu0 %v1693
    %2035 = vmatprep.subr.mxu0 %v1701
    %2036 = vmatpush1.msra.mxu0 %v1700
    %2037 = vmatprep.subr.mxu0 %v1708
    %2038 = vmatpush1.msra.mxu0 %v1707
    %2039 = vmatprep.subr.mxu0 %v1715
    %2040 = vmatpush1.msra.mxu0 %v1714
    %2041 = vmatprep.subr.mxu0 %v1722
    %2042 = vmatpush1.msra.mxu0 %v1721
    %2043 = vmatprep.subr.mxu0 %v1729
    %2044 = vmatpush1.msra.mxu0 %v1728
    %2045 = vmatprep.subr.mxu0 %v1736
    %2046 = vmatpush1.msra.mxu0 %v1735
    %2047 = vmatprep.subr.mxu0 %v1743
    %2048 = vmatpush1.msra.mxu0 %v1742
    %2049 = vmatprep.subr.mxu0 %v1750
    %2050 = vmatpush1.msra.mxu0 %v1749
    %2051 = vmatprep.subr.mxu0 %v1757
    %2052 = vmatpush1.msra.mxu0 %v1756
    %2053 = vmatprep.subr.mxu0 %v1764
    %2054 = vmatpush1.msra.mxu0 %v1763
    %2055 = vmatprep.subr.mxu0 %v1771
    %2056 = vmatpush1.msra.mxu0 %v1770
    %2057 = vmatprep.subr.mxu0 %v1778
    %2058 = vmatpush1.msra.mxu0 %v1777
    %2059 = vmatprep.subr.mxu0 %v1785
    %2060 = vmatpush1.msra.mxu0 %v1784
    %2061 = vmatprep.subr.mxu0 %v1792
    %2062 = vmatpush1.msra.mxu0 %v1791
    %2063 = vmatprep.subr.mxu0 %v1799
    %2064 = vmatpush1.msra.mxu0 %v1798
    %2065 = vmatprep.subr.mxu0 %v1806
    %2066 = vmatpush1.msra.mxu0 %v1805
    %2067 = vmatprep.subr.mxu0 %v1813
    %2068 = vmatpush1.msra.mxu0 %v1812
    %2069 = vmatprep.subr.mxu0 %v1820
    %2070 = vmatpush1.msra.mxu0 %v1819
    %2071 = vmatprep.subr.mxu0 %v1827
    %2072 = vmatpush1.msra.mxu0 %v1826
    %2073 = vmatprep.subr.mxu0 %v1834
    %2074 = vmatpush1.msra.mxu0 %v1833
    %2075 = vmatprep.subr.mxu0 %v1841
    %2076 = vmatpush1.msra.mxu0 %v1840
    %2077 = vmatprep.mubr.f32.mxu0 %v1620
    %2078 = vmatmul.mubr.f32.gmra.mrb[0].mxu0 %v1619
    %v2079 = vpop.f32.mrb[0].mxu0
    %v2080 = vadd.f32 %v1978, %v2079
    %v2081 = vpop.f32.mrb[0].mxu0
    %v2082 = vadd.f32 %v1982, %v2081
    %2083 = vdwg.mxu0
    %2084 = vmatprep.subr.mxu0 %v1848
    %2085 = vmatpush1.msra.mxu0 %v1847
    %2086 = vmatprep.subr.mxu0 %v1855
    %2087 = vmatpush1.msra.mxu0 %v1854
    %2088 = vmatprep.subr.mxu0 %v1862
    %2089 = vmatpush1.msra.mxu0 %v1861
    %2090 = vmatprep.subr.mxu0 %v1869
    %2091 = vmatpush1.msra.mxu0 %v1868
    %2092 = vmatprep.subr.mxu0 %v1876
    %2093 = vmatpush1.msra.mxu0 %v1875
    %2094 = vmatprep.subr.mxu0 %v1883
    %2095 = vmatpush1.msra.mxu0 %v1882
    %2096 = vmatprep.subr.mxu0 %v1890
    %2097 = vmatpush1.msra.mxu0 %v1889
    %2098 = vmatprep.subr.mxu0 %v1897
    %2099 = vmatpush1.msra.mxu0 %v1896
    %2100 = vmatprep.subr.mxu0 %v1904
    %2101 = vmatpush1.msra.mxu0 %v1903
    %2102 = vmatprep.subr.mxu0 %v1911
    %2103 = vmatpush1.msra.mxu0 %v1910
    %2104 = vmatprep.subr.mxu0 %v1918
    %2105 = vmatpush1.msra.mxu0 %v1917
    %2106 = vmatprep.subr.mxu0 %v1925
    %2107 = vmatpush1.msra.mxu0 %v1924
    %2108 = vmatprep.subr.mxu0 %v1932
    %2109 = vmatpush1.msra.mxu0 %v1931
    %2110 = vmatprep.subr.mxu0 %v1939
    %2111 = vmatpush1.msra.mxu0 %v1938
    %2112 = vmatprep.subr.mxu0 %v1946
    %2113 = vmatpush1.msra.mxu0 %v1945
    %2114 = vmatprep.subr.mxu0 %v1953
    %2115 = vmatpush1.msra.mxu0 %v1952
    %2116 = vmatprep.subr.mxu0 %v1960
    %2117 = vmatpush1.msra.mxu0 %v1959
    %2118 = vmatprep.subr.mxu0 %v1967
    %2119 = vmatpush1.msra.mxu0 %v1966
    %2120 = vmatprep.subr.mxu0 0.0
    %2121 = vmatpush1.msra.mxu0 0.0
    %2122 = vmatprep.subr.mxu0 0.0
    %2123 = vmatpush1.msra.mxu0 0.0
    %2124 = vmatprep.subr.mxu0 0.0
    %2125 = vmatpush1.msra.mxu0 0.0
    %2126 = vmatprep.subr.mxu0 0.0
    %2127 = vmatpush1.msra.mxu0 0.0
    %2128 = vmatprep.subr.mxu0 0.0
    %2129 = vmatpush1.msra.mxu0 0.0
    %2130 = vmatprep.subr.mxu0 0.0
    %2131 = vmatpush1.msra.mxu0 0.0
    %2132 = vmatprep.subr.mxu0 0.0
    %2133 = vmatpush1.msra.mxu0 0.0
    %2134 = vmatprep.subr.mxu0 0.0
    %2135 = vmatpush1.msra.mxu0 0.0
    %2136 = vmatprep.subr.mxu0 0.0
    %2137 = vmatpush1.msra.mxu0 0.0
    %2138 = vmatprep.subr.mxu0 0.0
    %2139 = vmatpush1.msra.mxu0 0.0
    %2140 = vmatprep.subr.mxu0 0.0
    %2141 = vmatpush1.msra.mxu0 0.0
    %2142 = vmatprep.subr.mxu0 0.0
    %2143 = vmatpush1.msra.mxu0 0.0
    %2144 = vmatprep.subr.mxu0 0.0
    %2145 = vmatpush1.msra.mxu0 0.0
    %2146 = vmatprep.subr.mxu0 0.0
    %2147 = vmatpush1.msra.mxu0 0.0
    %2148 = vmatprep.mubr.f32.mxu0 %v2011
    %2149 = vmatmul.mubr.f32.gmra.mrb[0].mxu0 %v1621
    %v2150 = vpop.f32.mrb[0].mxu0
    %v2151 = vadd.f32 %v2080, %v2150
    %v2152 = vpop.f32.mrb[0].mxu0
    %v2153 = vadd.f32 %v2082, %v2152
    %2154 = vdwg.mxu0
    %2155 = vmatprep.subr.mxu0 %v1626
    %2156 = vmatpush1.msra.mxu0 %v1625
    %2157 = vmatprep.subr.mxu0 %v1633
    %2158 = vmatpush1.msra.mxu0 %v1632
    %2159 = vmatprep.subr.mxu0 %v1640
    %2160 = vmatpush1.msra.mxu0 %v1639
    %2161 = vmatprep.subr.mxu0 %v1647
    %2162 = vmatpush1.msra.mxu0 %v1646
    %2163 = vmatprep.subr.mxu0 %v1654
    %2164 = vmatpush1.msra.mxu0 %v1653
    %2165 = vmatprep.subr.mxu0 %v1661
    %2166 = vmatpush1.msra.mxu0 %v1660
    %2167 = vmatprep.subr.mxu0 %v1668
    %2168 = vmatpush1.msra.mxu0 %v1667
    %2169 = vmatprep.subr.mxu0 %v1675
    %2170 = vmatpush1.msra.mxu0 %v1674
    %2171 = vmatprep.subr.mxu0 %v1682
    %2172 = vmatpush1.msra.mxu0 %v1681
    %2173 = vmatprep.subr.mxu0 %v1689
    %2174 = vmatpush1.msra.mxu0 %v1688
    %2175 = vmatprep.subr.mxu0 %v1696
    %2176 = vmatpush1.msra.mxu0 %v1695
    %2177 = vmatprep.subr.mxu0 %v1703
    %2178 = vmatpush1.msra.mxu0 %v1702
    %2179 = vmatprep.subr.mxu0 %v1710
    %2180 = vmatpush1.msra.mxu0 %v1709
    %2181 = vmatprep.subr.mxu0 %v1717
    %2182 = vmatpush1.msra.mxu0 %v1716
    %2183 = vmatprep.subr.mxu0 %v1724
    %2184 = vmatpush1.msra.mxu0 %v1723
    %2185 = vmatprep.subr.mxu0 %v1731
    %2186 = vmatpush1.msra.mxu0 %v1730
    %2187 = vmatprep.subr.mxu0 %v1738
    %2188 = vmatpush1.msra.mxu0 %v1737
    %2189 = vmatprep.subr.mxu0 %v1745
    %2190 = vmatpush1.msra.mxu0 %v1744
    %2191 = vmatprep.subr.mxu0 %v1752
    %2192 = vmatpush1.msra.mxu0 %v1751
    %2193 = vmatprep.subr.mxu0 %v1759
    %2194 = vmatpush1.msra.mxu0 %v1758
    %2195 = vmatprep.subr.mxu0 %v1766
    %2196 = vmatpush1.msra.mxu0 %v1765
    %2197 = vmatprep.subr.mxu0 %v1773
    %2198 = vmatpush1.msra.mxu0 %v1772
    %2199 = vmatprep.subr.mxu0 %v1780
    %2200 = vmatpush1.msra.mxu0 %v1779
    %2201 = vmatprep.subr.mxu0 %v1787
    %2202 = vmatpush1.msra.mxu0 %v1786
    %2203 = vmatprep.subr.mxu0 %v1794
    %2204 = vmatpush1.msra.mxu0 %v1793
    %2205 = vmatprep.subr.mxu0 %v1801
    %2206 = vmatpush1.msra.mxu0 %v1800
    %2207 = vmatprep.subr.mxu0 %v1808
    %2208 = vmatpush1.msra.mxu0 %v1807
    %2209 = vmatprep.subr.mxu0 %v1815
    %2210 = vmatpush1.msra.mxu0 %v1814
    %2211 = vmatprep.subr.mxu0 %v1822
    %2212 = vmatpush1.msra.mxu0 %v1821
    %2213 = vmatprep.subr.mxu0 %v1829
    %2214 = vmatpush1.msra.mxu0 %v1828
    %2215 = vmatprep.subr.mxu0 %v1836
    %2216 = vmatpush1.msra.mxu0 %v1835
    %2217 = vmatprep.subr.mxu0 %v1843
    %2218 = vmatpush1.msra.mxu0 %v1842
    %2219 = vmatprep.mubr.f32.mxu0 %v1620
    %2220 = vmatmul.mubr.f32.gmra.mrb[0].mxu0 %v1619
    %v2221 = vpop.f32.mrb[0].mxu0
    %v2222 = vadd.f32 %v1986, %v2221
    %v2223 = vpop.f32.mrb[0].mxu0
    %v2224 = vadd.f32 %v1990, %v2223
    %2225 = vdwg.mxu0
    %2226 = vmatprep.subr.mxu0 %v1850
    %2227 = vmatpush1.msra.mxu0 %v1849
    %2228 = vmatprep.subr.mxu0 %v1857
    %2229 = vmatpush1.msra.mxu0 %v1856
    %2230 = vmatprep.subr.mxu0 %v1864
    %2231 = vmatpush1.msra.mxu0 %v1863
    %2232 = vmatprep.subr.mxu0 %v1871
    %2233 = vmatpush1.msra.mxu0 %v1870
    %2234 = vmatprep.subr.mxu0 %v1878
    %2235 = vmatpush1.msra.mxu0 %v1877
    %2236 = vmatprep.subr.mxu0 %v1885
    %2237 = vmatpush1.msra.mxu0 %v1884
    %2238 = vmatprep.subr.mxu0 %v1892
    %2239 = vmatpush1.msra.mxu0 %v1891
    %2240 = vmatprep.subr.mxu0 %v1899
    %2241 = vmatpush1.msra.mxu0 %v1898
    %2242 = vmatprep.subr.mxu0 %v1906
    %2243 = vmatpush1.msra.mxu0 %v1905
    %2244 = vmatprep.subr.mxu0 %v1913
    %2245 = vmatpush1.msra.mxu0 %v1912
    %2246 = vmatprep.subr.mxu0 %v1920
    %2247 = vmatpush1.msra.mxu0 %v1919
    %2248 = vmatprep.subr.mxu0 %v1927
    %2249 = vmatpush1.msra.mxu0 %v1926
    %2250 = vmatprep.subr.mxu0 %v1934
    %2251 = vmatpush1.msra.mxu0 %v1933
    %2252 = vmatprep.subr.mxu0 %v1941
    %2253 = vmatpush1.msra.mxu0 %v1940
    %2254 = vmatprep.subr.mxu0 %v1948
    %2255 = vmatpush1.msra.mxu0 %v1947
    %2256 = vmatprep.subr.mxu0 %v1955
    %2257 = vmatpush1.msra.mxu0 %v1954
    %2258 = vmatprep.subr.mxu0 %v1962
    %2259 = vmatpush1.msra.mxu0 %v1961
    %2260 = vmatprep.subr.mxu0 %v1969
    %2261 = vmatpush1.msra.mxu0 %v1968
    %2262 = vmatprep.subr.mxu0 0.0
    %2263 = vmatpush1.msra.mxu0 0.0
    %2264 = vmatprep.subr.mxu0 0.0
    %2265 = vmatpush1.msra.mxu0 0.0
    %2266 = vmatprep.subr.mxu0 0.0
    %2267 = vmatpush1.msra.mxu0 0.0
    %2268 = vmatprep.subr.mxu0 0.0
    %2269 = vmatpush1.msra.mxu0 0.0
    %2270 = vmatprep.subr.mxu0 0.0
    %2271 = vmatpush1.msra.mxu0 0.0
    %2272 = vmatprep.subr.mxu0 0.0
    %2273 = vmatpush1.msra.mxu0 0.0
    %2274 = vmatprep.subr.mxu0 0.0
    %2275 = vmatpush1.msra.mxu0 0.0
    %2276 = vmatprep.subr.mxu0 0.0
    %2277 = vmatpush1.msra.mxu0 0.0
    %2278 = vmatprep.subr.mxu0 0.0
    %2279 = vmatpush1.msra.mxu0 0.0
    %2280 = vmatprep.subr.mxu0 0.0
    %2281 = vmatpush1.msra.mxu0 0.0
    %2282 = vmatprep.subr.mxu0 0.0
    %2283 = vmatpush1.msra.mxu0 0.0
    %2284 = vmatprep.subr.mxu0 0.0
    %2285 = vmatpush1.msra.mxu0 0.0
    %2286 = vmatprep.subr.mxu0 0.0
    %2287 = vmatpush1.msra.mxu0 0.0
    %2288 = vmatprep.subr.mxu0 0.0
    %2289 = vmatpush1.msra.mxu0 0.0
    %2290 = vmatprep.mubr.f32.mxu0 %v2011
    %2291 = vmatmul.mubr.f32.gmra.mrb[0].mxu0 %v1621
    %v2292 = vpop.f32.mrb[0].mxu0
    %v2293 = vadd.f32 %v2222, %v2292
    %v2294 = vpop.f32.mrb[0].mxu0
    %v2295 = vadd.f32 %v2224, %v2294
    %2296 = vdwg.mxu0
    %2297 = vmatprep.subr.mxu0 %v1628
    %2298 = vmatpush1.msra.mxu0 %v1627
    %2299 = vmatprep.subr.mxu0 %v1635
    %2300 = vmatpush1.msra.mxu0 %v1634
    %2301 = vmatprep.subr.mxu0 %v1642
    %2302 = vmatpush1.msra.mxu0 %v1641
    %2303 = vmatprep.subr.mxu0 %v1649
    %2304 = vmatpush1.msra.mxu0 %v1648
    %2305 = vmatprep.subr.mxu0 %v1656
    %2306 = vmatpush1.msra.mxu0 %v1655
    %2307 = vmatprep.subr.mxu0 %v1663
    %2308 = vmatpush1.msra.mxu0 %v1662
    %2309 = vmatprep.subr.mxu0 %v1670
    %2310 = vmatpush1.msra.mxu0 %v1669
    %2311 = vmatprep.subr.mxu0 %v1677
    %2312 = vmatpush1.msra.mxu0 %v1676
    %2313 = vmatprep.subr.mxu0 %v1684
    %2314 = vmatpush1.msra.mxu0 %v1683
    %2315 = vmatprep.subr.mxu0 %v1691
    %2316 = vmatpush1.msra.mxu0 %v1690
    %2317 = vmatprep.subr.mxu0 %v1698
    %2318 = vmatpush1.msra.mxu0 %v1697
    %2319 = vmatprep.subr.mxu0 %v1705
    %2320 = vmatpush1.msra.mxu0 %v1704
    %2321 = vmatprep.subr.mxu0 %v1712
    %2322 = vmatpush1.msra.mxu0 %v1711
    %2323 = vmatprep.subr.mxu0 %v1719
    %2324 = vmatpush1.msra.mxu0 %v1718
    %2325 = vmatprep.subr.mxu0 %v1726
    %2326 = vmatpush1.msra.mxu0 %v1725
    %2327 = vmatprep.subr.mxu0 %v1733
    %2328 = vmatpush1.msra.mxu0 %v1732
    %2329 = vmatprep.subr.mxu0 %v1740
    %2330 = vmatpush1.msra.mxu0 %v1739
    %2331 = vmatprep.subr.mxu0 %v1747
    %2332 = vmatpush1.msra.mxu0 %v1746
    %2333 = vmatprep.subr.mxu0 %v1754
    %2334 = vmatpush1.msra.mxu0 %v1753
    %2335 = vmatprep.subr.mxu0 %v1761
    %2336 = vmatpush1.msra.mxu0 %v1760
    %2337 = vmatprep.subr.mxu0 %v1768
    %2338 = vmatpush1.msra.mxu0 %v1767
    %2339 = vmatprep.subr.mxu0 %v1775
    %2340 = vmatpush1.msra.mxu0 %v1774
    %2341 = vmatprep.subr.mxu0 %v1782
    %2342 = vmatpush1.msra.mxu0 %v1781
    %2343 = vmatprep.subr.mxu0 %v1789
    %2344 = vmatpush1.msra.mxu0 %v1788
    %2345 = vmatprep.subr.mxu0 %v1796
    %2346 = vmatpush1.msra.mxu0 %v1795
    %2347 = vmatprep.subr.mxu0 %v1803
    %2348 = vmatpush1.msra.mxu0 %v1802
    %2349 = vmatprep.subr.mxu0 %v1810
    %2350 = vmatpush1.msra.mxu0 %v1809
    %2351 = vmatprep.subr.mxu0 %v1817
    %2352 = vmatpush1.msra.mxu0 %v1816
    %2353 = vmatprep.subr.mxu0 %v1824
    %2354 = vmatpush1.msra.mxu0 %v1823
    %2355 = vmatprep.subr.mxu0 %v1831
    %2356 = vmatpush1.msra.mxu0 %v1830
    %2357 = vmatprep.subr.mxu0 %v1838
    %2358 = vmatpush1.msra.mxu0 %v1837
    %2359 = vmatprep.subr.mxu0 %v1845
    %2360 = vmatpush1.msra.mxu0 %v1844
    %2361 = vmatprep.mubr.f32.mxu0 %v1620
    %2362 = vmatmul.mubr.f32.gmra.mrb[0].mxu0 %v1619
    %v2363 = vpop.f32.mrb[0].mxu0
    %v2364 = vadd.f32 %v1994, %v2363
    %v2365 = vpop.f32.mrb[0].mxu0
    %v2366 = vadd.f32 %v1998, %v2365
    %2367 = vdwg.mxu0
    %2368 = vmatprep.subr.mxu0 %v1852
    %2369 = vmatpush1.msra.mxu0 %v1851
    %2370 = vmatprep.subr.mxu0 %v1859
    %2371 = vmatpush1.msra.mxu0 %v1858
    %2372 = vmatprep.subr.mxu0 %v1866
    %2373 = vmatpush1.msra.mxu0 %v1865
    %2374 = vmatprep.subr.mxu0 %v1873
    %2375 = vmatpush1.msra.mxu0 %v1872
    %2376 = vmatprep.subr.mxu0 %v1880
    %2377 = vmatpush1.msra.mxu0 %v1879
    %2378 = vmatprep.subr.mxu0 %v1887
    %2379 = vmatpush1.msra.mxu0 %v1886
    %2380 = vmatprep.subr.mxu0 %v1894
    %2381 = vmatpush1.msra.mxu0 %v1893
    %2382 = vmatprep.subr.mxu0 %v1901
    %2383 = vmatpush1.msra.mxu0 %v1900
    %2384 = vmatprep.subr.mxu0 %v1908
    %2385 = vmatpush1.msra.mxu0 %v1907
    %2386 = vmatprep.subr.mxu0 %v1915
    %2387 = vmatpush1.msra.mxu0 %v1914
    %2388 = vmatprep.subr.mxu0 %v1922
    %2389 = vmatpush1.msra.mxu0 %v1921
    %2390 = vmatprep.subr.mxu0 %v1929
    %2391 = vmatpush1.msra.mxu0 %v1928
    %2392 = vmatprep.subr.mxu0 %v1936
    %2393 = vmatpush1.msra.mxu0 %v1935
    %2394 = vmatprep.subr.mxu0 %v1943
    %2395 = vmatpush1.msra.mxu0 %v1942
    %2396 = vmatprep.subr.mxu0 %v1950
    %2397 = vmatpush1.msra.mxu0 %v1949
    %2398 = vmatprep.subr.mxu0 %v1957
    %2399 = vmatpush1.msra.mxu0 %v1956
    %2400 = vmatprep.subr.mxu0 %v1964
    %2401 = vmatpush1.msra.mxu0 %v1963
    %2402 = vmatprep.subr.mxu0 %v1971
    %2403 = vmatpush1.msra.mxu0 %v1970
    %2404 = vmatprep.subr.mxu0 0.0
    %2405 = vmatpush1.msra.mxu0 0.0
    %2406 = vmatprep.subr.mxu0 0.0
    %2407 = vmatpush1.msra.mxu0 0.0
    %2408 = vmatprep.subr.mxu0 0.0
    %2409 = vmatpush1.msra.mxu0 0.0
    %2410 = vmatprep.subr.mxu0 0.0
    %2411 = vmatpush1.msra.mxu0 0.0
    %2412 = vmatprep.subr.mxu0 0.0
    %2413 = vmatpush1.msra.mxu0 0.0
    %2414 = vmatprep.subr.mxu0 0.0
    %2415 = vmatpush1.msra.mxu0 0.0
    %2416 = vmatprep.subr.mxu0 0.0
    %2417 = vmatpush1.msra.mxu0 0.0
    %2418 = vmatprep.subr.mxu0 0.0
    %2419 = vmatpush1.msra.mxu0 0.0
    %2420 = vmatprep.subr.mxu0 0.0
    %2421 = vmatpush1.msra.mxu0 0.0
    %2422 = vmatprep.subr.mxu0 0.0
    %2423 = vmatpush1.msra.mxu0 0.0
    %2424 = vmatprep.subr.mxu0 0.0
    %2425 = vmatpush1.msra.mxu0 0.0
    %2426 = vmatprep.subr.mxu0 0.0
    %2427 = vmatpush1.msra.mxu0 0.0
    %2428 = vmatprep.subr.mxu0 0.0
    %2429 = vmatpush1.msra.mxu0 0.0
    %2430 = vmatprep.subr.mxu0 0.0
    %2431 = vmatpush1.msra.mxu0 0.0
    %2432 = vmatprep.mubr.f32.mxu0 %v2011
    %2433 = vmatmul.mubr.f32.gmra.mrb[0].mxu0 %v1621
    %v2434 = vpop.f32.mrb[0].mxu0
    %v2435 = vadd.f32 %v2364, %v2434
    %v2436 = vpop.f32.mrb[0].mxu0
    %v2437 = vadd.f32 %v2366, %v2436
    %2438 = vdwg.mxu0
    %2439 = vmatprep.subr.mxu0 0.0
    %2440 = vmatpush1.msra.mxu0 %v1629
    %2441 = vmatprep.subr.mxu0 0.0
    %2442 = vmatpush1.msra.mxu0 %v1636
    %2443 = vmatprep.subr.mxu0 0.0
    %2444 = vmatpush1.msra.mxu0 %v1643
    %2445 = vmatprep.subr.mxu0 0.0
    %2446 = vmatpush1.msra.mxu0 %v1650
    %2447 = vmatprep.subr.mxu0 0.0
    %2448 = vmatpush1.msra.mxu0 %v1657
    %2449 = vmatprep.subr.mxu0 0.0
    %2450 = vmatpush1.msra.mxu0 %v1664
    %2451 = vmatprep.subr.mxu0 0.0
    %2452 = vmatpush1.msra.mxu0 %v1671
    %2453 = vmatprep.subr.mxu0 0.0
    %2454 = vmatpush1.msra.mxu0 %v1678
    %2455 = vmatprep.subr.mxu0 0.0
    %2456 = vmatpush1.msra.mxu0 %v1685
    %2457 = vmatprep.subr.mxu0 0.0
    %2458 = vmatpush1.msra.mxu0 %v1692
    %2459 = vmatprep.subr.mxu0 0.0
    %2460 = vmatpush1.msra.mxu0 %v1699
    %2461 = vmatprep.subr.mxu0 0.0
    %2462 = vmatpush1.msra.mxu0 %v1706
    %2463 = vmatprep.subr.mxu0 0.0
    %2464 = vmatpush1.msra.mxu0 %v1713
    %2465 = vmatprep.subr.mxu0 0.0
    %2466 = vmatpush1.msra.mxu0 %v1720
    %2467 = vmatprep.subr.mxu0 0.0
    %2468 = vmatpush1.msra.mxu0 %v1727
    %2469 = vmatprep.subr.mxu0 0.0
    %2470 = vmatpush1.msra.mxu0 %v1734
    %2471 = vmatprep.subr.mxu0 0.0
    %2472 = vmatpush1.msra.mxu0 %v1741
    %2473 = vmatprep.subr.mxu0 0.0
    %2474 = vmatpush1.msra.mxu0 %v1748
    %2475 = vmatprep.subr.mxu0 0.0
    %2476 = vmatpush1.msra.mxu0 %v1755
    %2477 = vmatprep.subr.mxu0 0.0
    %2478 = vmatpush1.msra.mxu0 %v1762
    %2479 = vmatprep.subr.mxu0 0.0
    %2480 = vmatpush1.msra.mxu0 %v1769
    %2481 = vmatprep.subr.mxu0 0.0
    %2482 = vmatpush1.msra.mxu0 %v1776
    %2483 = vmatprep.subr.mxu0 0.0
    %2484 = vmatpush1.msra.mxu0 %v1783
    %2485 = vmatprep.subr.mxu0 0.0
    %2486 = vmatpush1.msra.mxu0 %v1790
    %2487 = vmatprep.subr.mxu0 0.0
    %2488 = vmatpush1.msra.mxu0 %v1797
    %2489 = vmatprep.subr.mxu0 0.0
    %2490 = vmatpush1.msra.mxu0 %v1804
    %2491 = vmatprep.subr.mxu0 0.0
    %2492 = vmatpush1.msra.mxu0 %v1811
    %2493 = vmatprep.subr.mxu0 0.0
    %2494 = vmatpush1.msra.mxu0 %v1818
    %2495 = vmatprep.subr.mxu0 0.0
    %2496 = vmatpush1.msra.mxu0 %v1825
    %2497 = vmatprep.subr.mxu0 0.0
    %2498 = vmatpush1.msra.mxu0 %v1832
    %2499 = vmatprep.subr.mxu0 0.0
    %2500 = vmatpush1.msra.mxu0 %v1839
    %2501 = vmatprep.subr.mxu0 0.0
    %2502 = vmatpush1.msra.mxu0 %v1846
    %2503 = vmatprep.mubr.f32.mxu0 %v1620
    %2504 = vmatmul.mubr.f32.gmra.mrb[0].mxu0 %v1619
    %v2505 = vpop.f32.mrb[0].mxu0
    %v2506 = vadd.f32 %v2002, %v2505
    %v2507 = vpop.f32.mrb[0].mxu0
    %2508 = vdwg.mxu0
    %2509 = vmatprep.subr.mxu0 0.0
    %2510 = vmatpush1.msra.mxu0 %v1853
    %2511 = vmatprep.subr.mxu0 0.0
    %2512 = vmatpush1.msra.mxu0 %v1860
    %2513 = vmatprep.subr.mxu0 0.0
    %2514 = vmatpush1.msra.mxu0 %v1867
    %2515 = vmatprep.subr.mxu0 0.0
    %2516 = vmatpush1.msra.mxu0 %v1874
    %2517 = vmatprep.subr.mxu0 0.0
    %2518 = vmatpush1.msra.mxu0 %v1881
    %2519 = vmatprep.subr.mxu0 0.0
    %2520 = vmatpush1.msra.mxu0 %v1888
    %2521 = vmatprep.subr.mxu0 0.0
    %2522 = vmatpush1.msra.mxu0 %v1895
    %2523 = vmatprep.subr.mxu0 0.0
    %2524 = vmatpush1.msra.mxu0 %v1902
    %2525 = vmatprep.subr.mxu0 0.0
    %2526 = vmatpush1.msra.mxu0 %v1909
    %2527 = vmatprep.subr.mxu0 0.0
    %2528 = vmatpush1.msra.mxu0 %v1916
    %2529 = vmatprep.subr.mxu0 0.0
    %2530 = vmatpush1.msra.mxu0 %v1923
    %2531 = vmatprep.subr.mxu0 0.0
    %2532 = vmatpush1.msra.mxu0 %v1930
    %2533 = vmatprep.subr.mxu0 0.0
    %2534 = vmatpush1.msra.mxu0 %v1937
    %2535 = vmatprep.subr.mxu0 0.0
    %2536 = vmatpush1.msra.mxu0 %v1944
    %2537 = vmatprep.subr.mxu0 0.0
    %2538 = vmatpush1.msra.mxu0 %v1951
    %2539 = vmatprep.subr.mxu0 0.0
    %2540 = vmatpush1.msra.mxu0 %v1958
    %2541 = vmatprep.subr.mxu0 0.0
    %2542 = vmatpush1.msra.mxu0 %v1965
    %2543 = vmatprep.subr.mxu0 0.0
    %2544 = vmatpush1.msra.mxu0 %v1972
    %2545 = vmatprep.subr.mxu0 0.0
    %2546 = vmatpush1.msra.mxu0 0.0
    %2547 = vmatprep.subr.mxu0 0.0
    %2548 = vmatpush1.msra.mxu0 0.0
    %2549 = vmatprep.subr.mxu0 0.0
    %2550 = vmatpush1.msra.mxu0 0.0
    %2551 = vmatprep.subr.mxu0 0.0
    %2552 = vmatpush1.msra.mxu0 0.0
    %2553 = vmatprep.subr.mxu0 0.0
    %2554 = vmatpush1.msra.mxu0 0.0
    %2555 = vmatprep.subr.mxu0 0.0
    %2556 = vmatpush1.msra.mxu0 0.0
    %2557 = vmatprep.subr.mxu0 0.0
    %2558 = vmatpush1.msra.mxu0 0.0
    %2559 = vmatprep.subr.mxu0 0.0
    %2560 = vmatpush1.msra.mxu0 0.0
    %2561 = vmatprep.subr.mxu0 0.0
    %2562 = vmatpush1.msra.mxu0 0.0
    %2563 = vmatprep.subr.mxu0 0.0
    %2564 = vmatpush1.msra.mxu0 0.0
    %2565 = vmatprep.subr.mxu0 0.0
    %2566 = vmatpush1.msra.mxu0 0.0
    %2567 = vmatprep.subr.mxu0 0.0
    %2568 = vmatpush1.msra.mxu0 0.0
    %2569 = vmatprep.subr.mxu0 0.0
    %2570 = vmatpush1.msra.mxu0 0.0
    %2571 = vmatprep.subr.mxu0 0.0
    %2572 = vmatpush1.msra.mxu0 0.0
    %2573 = vmatprep.mubr.f32.mxu0 %v2011
    %2574 = vmatmul.mubr.f32.gmra.mrb[0].mxu0 %v1621
    %v2575 = vpop.f32.mrb[0].mxu0
    %v2576 = vadd.f32 %v2506, %v2575
    %v2577 = vpop.f32.mrb[0].mxu0
    %2578 = vdwg.mxu0
    %v2579 = vxor.u32 %v2151, 2147483648
    %v2580 = vxor.u32 %v2153, 2147483648
    %v2581 = vxor.u32 %v2293, 2147483648
    %v2582 = vxor.u32 %v2295, 2147483648
    %v2583 = vxor.u32 %v2435, 2147483648
    %v2584 = vxor.u32 %v2437, 2147483648
    %v2585 = vxor.u32 %v2576, 2147483648
    %v2586 = vmul.f32 %v2579, 1.442695
    %v2587 = vpow.pop %v2586
    %v2588 = vmul.f32 %v2580, 1.442695
    %v2589 = vpow.pop %v2588
    %v2590 = vmul.f32 %v2581, 1.442695
    %v2591 = vpow.pop %v2590
    %v2592 = vmul.f32 %v2582, 1.442695
    %v2593 = vpow.pop %v2592
    %v2594 = vmul.f32 %v2583, 1.442695
    %v2595 = vpow.pop %v2594
    %v2596 = vmul.f32 %v2584, 1.442695
    %v2597 = vpow.pop %v2596
    %v2598 = vmul.f32 %v2585, 1.442695
    %v2599 = vpow.pop %v2598
    %v2600 = vadd.f32 %v2587, 1.0
    %v2601 = vadd.f32 %v2589, 1.0
    %v2602 = vadd.f32 %v2591, 1.0
    %v2603 = vadd.f32 %v2593, 1.0
    %v2604 = vadd.f32 %v2595, 1.0
    %v2605 = vadd.f32 %v2597, 1.0
    %v2606 = vadd.f32 %v2599, 1.0
    %v2607 = vrcp.pop %v2600
    %v2608 = vmul.f32 1.0, %v2607
    %v2609 = vrcp.pop %v2601
    %v2610 = vmul.f32 1.0, %v2609
    %v2611 = vrcp.pop %v2602
    %v2612 = vmul.f32 1.0, %v2611
    %v2613 = vrcp.pop %v2603
    %v2614 = vmul.f32 1.0, %v2613
    %v2615 = vrcp.pop %v2604
    %v2616 = vmul.f32 1.0, %v2615
    %v2617 = vrcp.pop %v2605
    %v2618 = vmul.f32 1.0, %v2617
    %v2619 = vrcp.pop %v2606
    %v2620 = vmul.f32 1.0, %v2619
    %2621 = vst [vmem:[#allocation2] sm:$0xff] %v2608
    %2622 = vst [vmem:[#allocation2 + $0x8] sm:$0xff] %v2610
    %2623 = vst [vmem:[#allocation2 + $0x10] sm:$0xff] %v2612
    %2624 = vst [vmem:[#allocation2 + $0x18] sm:$0xff] %v2614
    %2625 = vst [vmem:[#allocation2 + $0x20] sm:$0xff] %v2616
    %2626 = vst [vmem:[#allocation2 + $0x28] sm:$0xff] %v2618
    %2627 = vst.msk [vmem:[#allocation2 + $0x30] sm:$0xff] %vm468, %v2620
    // Predicated region
    $region54: #{tsne_forward.1} parent=1 // pred_check
      _
    $region55: #{tsne_forward.1} parent=1 // pred_check_branch
      %2629 = sbr.rel (0) target = $region57
    $region56: #{tsne_forward.1} parent=1 // pred_region
      _
    $region57: #{tsne_forward.1} parent=1 // pred_fallthru
      _
    // Predicated region
    $region58: #{tsne_forward.1} parent=1 // pred_check
      _
    $region59: #{tsne_forward.1} parent=1 // pred_check_branch
      %2631 = sbr.rel (0) target = $region61
    $region60: #{tsne_forward.1} parent=1 // pred_region
      %s2633 = ssub.s32 896, 896
      %2634 = vsyncadd [#allocation3], %s2633
      %s2636 = sshll.u32 [#allocation2], 4
      %s2637 = int_to_ptr.vmem [resolvable:$true] %s2636
      %2639 = dma.vmem_to_hbm [thread:$0]  %s2637, 896, %s14, [#allocation3]
    $region61: #{tsne_forward.1} parent=1 // pred_fallthru
      _
    // Predicated region
    $region62: #{tsne_forward.1} parent=1 // pred_check
      _
    $region63: #{tsne_forward.1} parent=1 // pred_check_branch
      %2641 = sbr.rel (0) target = $region65
    $region64: #{tsne_forward.1} parent=1 // pred_region
      _
    $region65: #{tsne_forward.1} parent=1 // pred_fallthru
      _
    // Predicated region
    $region66: #{tsne_forward.1} parent=1 // pred_check
      _
    $region67: #{tsne_forward.1} parent=1 // pred_check_branch
      %2643 = sbr.rel (0) target = $region69
    $region68: #{tsne_forward.1} parent=1 // pred_region
      %2644 = dma.done [#allocation3], 896
    $region69: #{tsne_forward.1} parent=1 // pred_fallthru
      _
    %2645 = vsyncpa [#allocation3], 1

</llo_original>
